<compile_context>
chip_gen: v7x
topology: tpu7x:2x2x1
jax: 0.10.0
libtpu: 0.0.40
codegen_flags: <defaults>
</compile_context>

<pallas_src>
import functools

import jax
import jax.numpy as jnp
from jax.experimental import pallas as pl
from jax.experimental.pallas import tpu as pltpu


def _round_up(n, m):
    return ((n + m - 1) // m) * m


def _vae_fused_kernel(
    x_ref,       # (TB, D)   bf16 flattened input tile
    eps_ref,     # (TB, L)   f32 reparameterization noise tile
    ew1_ref,     # (D, H)    bf16
    eb1_ref,     # (1, H)    f32
    wml_ref,     # (H, 2L)   bf16  (mu | logvar heads fused)
    bml_ref,     # (1, 2L)   f32
    dw1_ref,     # (L, H)    bf16
    db1_ref,     # (1, H)    f32
    dw2_ref,     # (H, D)    bf16
    db2_ref,     # (1, D)    f32
    recon_ref,   # (TB, D)   f32 out: reconstruction (flat)
    lat_ref,     # (TB, LAT_W) f32 out: [mu | logvar | z | zero-pad] lane-dense slab
):
    L = eps_ref.shape[-1]

    # ---- encoder ----
    x = x_ref[...]                                                     # bf16
    h = jnp.dot(x, ew1_ref[...], preferred_element_type=jnp.float32) + eb1_ref[...]
    h = jnp.maximum(h, 0.0)                                            # f32 elementwise

    ml = (jnp.dot(h.astype(wml_ref.dtype), wml_ref[...],
                  preferred_element_type=jnp.float32) + bml_ref[...])  # (TB, 2L)
    mu = ml[:, :L]
    logvar = ml[:, L:]

    # ---- reparameterize (training): z = mu + eps * exp(0.5 * logvar) ----
    std = jnp.exp(0.5 * logvar)
    z = mu + eps_ref[...] * std

    # ---- decoder ----
    hd = (jnp.dot(z.astype(dw1_ref.dtype), dw1_ref[...],
                  preferred_element_type=jnp.float32) + db1_ref[...])
    hd = jnp.maximum(hd, 0.0)
    logits = (jnp.dot(hd.astype(dw2_ref.dtype), dw2_ref[...],
                      preferred_element_type=jnp.float32) + db2_ref[...])
    # sigmoid(x) = 1 / (1 + exp(-x)); reciprocal on the EUP slot.
    recon = pl.reciprocal(1.0 + jnp.exp(-logits), approx=True)

    recon_ref[...] = recon

    # pack small outputs into one lane-dense slab: [mu | logvar | z | pad]
    pad_w = lat_ref.shape[-1] - 3 * L
    pieces = [mu, logvar, z]
    if pad_w > 0:
        pieces.append(jnp.zeros((mu.shape[0], pad_w), jnp.float32))
    lat_ref[...] = jnp.concatenate(pieces, axis=-1)


def extend_vae_forward(x, eps, params):
    """x: (B, C, H, W) f32 NCHW. eps: (B, L) f32. Returns (recon, (mu, logvar), z)."""
    B, C, H, W = x.shape
    D = C * H * W
    Hh = params["ew1"].shape[1]
    L = params["dw1"].shape[0]
    LAT_W = max(128, _round_up(3 * L, 128))  # lane-dense packed latent slab width

    # Batch tile: multiple of 8 sublanes; 256 once B is large enough (MXU-friendly).
    TB = min(256, _round_up(B, 8))
    B_pad = _round_up(B, TB)
    n_tiles = B_pad // TB

    x_flat = x.reshape(B, D).astype(jnp.bfloat16)
    if B_pad != B:
        x_flat = jnp.pad(x_flat, ((0, B_pad - B), (0, 0)))
        eps_p = jnp.pad(eps, ((0, B_pad - B), (0, 0)))
    else:
        eps_p = eps

    weight_args = (
        params["ew1"], params["eb1"],
        params["wml"], params["bml"],
        params["dw1"], params["db1"],
        params["dw2"], params["db2"],
    )

    # Weights stay VMEM-resident across grid steps (constant index_map).
    def _resident(shape):
        return pl.BlockSpec(shape, lambda i: tuple(0 for _ in shape))

    in_specs = [
        pl.BlockSpec((TB, D), lambda i: (i, 0)),   # x tile
        pl.BlockSpec((TB, L), lambda i: (i, 0)),   # eps tile
    ] + [_resident(w.shape) for w in weight_args]

    out_specs = (
        pl.BlockSpec((TB, D), lambda i: (i, 0)),        # recon tile
        pl.BlockSpec((TB, LAT_W), lambda i: (i, 0)),    # packed latent tile
    )

    out_shapes = (
        jax.ShapeDtypeStruct((B_pad, D), jnp.float32),
        jax.ShapeDtypeStruct((B_pad, LAT_W), jnp.float32),
    )

    # VMEM budget from actual block footprint (bf16 weights, double-buffered I/O tiles).
    weight_bytes = (D * Hh + Hh * 2 * L + L * Hh + Hh * D) * 2 \
                   + (Hh + 2 * L + Hh + D) * 4
    io_bytes = 2 * (TB * D * 2 + TB * L * 4) + 2 * (TB * D * 4 + TB * LAT_W * 4)
    vmem_limit = min(int(1.5 * (weight_bytes + io_bytes)) + (4 << 20), 48 << 20)

    recon_flat, lat = pl.pallas_call(
        _vae_fused_kernel,
        grid=(n_tiles,),
        out_shape=out_shapes,
        in_specs=in_specs,
        out_specs=out_specs,
        compiler_params=pltpu.CompilerParams(
            dimension_semantics=("parallel",),   # shard batch tiles across TCs (v7x)
            vmem_limit_bytes=vmem_limit,
        ),
    )(x_flat, eps_p, *weight_args)

    recon = recon_flat[:B].reshape(B, C, H, W)
    mu = lat[:B, 0 * L:1 * L]
    logvar = lat[:B, 1 * L:2 * L]
    z = lat[:B, 2 * L:3 * L]
    return recon, (mu, logvar), z


def init_params(key, D, Hh, L):
    """Raw f32 params (PyTorch-layout-equivalent MLP VAE)."""
    ks = jax.random.split(key, 5)
    s_in = 1.0 / jnp.sqrt(D)
    s_h = 1.0 / jnp.sqrt(Hh)
    s_l = 1.0 / jnp.sqrt(L)
    return {
        "ew1": jax.random.normal(ks[0], (D, Hh), jnp.float32) * s_in,
        "eb1": jnp.zeros((1, Hh), jnp.float32),
        "wmu": jax.random.normal(ks[1], (Hh, L), jnp.float32) * s_h,
        "bmu": jnp.zeros((1, L), jnp.float32),
        "wlv": jax.random.normal(ks[2], (Hh, L), jnp.float32) * s_h,
        "blv": jnp.zeros((1, L), jnp.float32),
        "dw1": jax.random.normal(ks[3], (L, Hh), jnp.float32) * s_l,
        "db1": jnp.zeros((1, Hh), jnp.float32),
        "dw2": jax.random.normal(ks[4], (Hh, D), jnp.float32) * s_h,
        "db2": jnp.zeros((1, D), jnp.float32),
    }


def pack_params(p):
    """Fuse mu/logvar heads and cast matmul weights to bf16 (biases stay f32)."""
    return {
        "ew1": p["ew1"].astype(jnp.bfloat16),
        "eb1": p["eb1"],
        "wml": jnp.concatenate([p["wmu"], p["wlv"]], axis=1).astype(jnp.bfloat16),
        "bml": jnp.concatenate([p["bmu"], p["blv"]], axis=1),
        "dw1": p["dw1"].astype(jnp.bfloat16),
        "db1": p["db1"],
        "dw2": p["dw2"].astype(jnp.bfloat16),
        "db2": p["db2"],
    }


def reference_forward(x, eps, pp):
    """Pure-JAX reference mirroring the kernel's bf16-matmul / f32-accumulate math."""
    B = x.shape[0]
    L = pp["dw1"].shape[0]
    xf = x.reshape(B, -1).astype(jnp.bfloat16)
    h = jnp.maximum(
        jnp.dot(xf, pp["ew1"], preferred_element_type=jnp.float32) + pp["eb1"], 0.0)
    ml = jnp.dot(h.astype(jnp.bfloat16), pp["wml"],
                 preferred_element_type=jnp.float32) + pp["bml"]
    mu, logvar = ml[:, :L], ml[:, L:]
    z = mu + eps * jnp.exp(0.5 * logvar)
    hd = jnp.maximum(
        jnp.dot(z.astype(jnp.bfloat16), pp["dw1"],
                preferred_element_type=jnp.float32) + pp["db1"], 0.0)
    logits = jnp.dot(hd.astype(jnp.bfloat16), pp["dw2"],
                     preferred_element_type=jnp.float32) + pp["db2"]
    recon = jax.nn.sigmoid(logits).reshape(x.shape)
    return recon, (mu, logvar), z


if __name__ == "__main__":
    # NOTE: at B=2 this path is overhead-bound; the kernel is sized/tiled for
    # effective batches >= 128 (ideally 256) where the batch grid pipelines.
    B, C, H, W = 2, 4, 16, 16
    D = C * H * W          # 1024
    HIDDEN = 256
    LATENT = 32

    key = jax.random.PRNGKey(0)
    k_x, k_eps, k_p = jax.random.split(key, 3)

    x = jax.nn.sigmoid(jax.random.normal(k_x, (B, C, H, W), jnp.float32))
    # Deterministic reparameterization noise (stand-in for torch.randn_like).
    eps = jax.random.normal(k_eps, (B, LATENT), jnp.float32)
    params = pack_params(init_params(k_p, D, HIDDEN, LATENT))

    recon, (mu, logvar), z = jax.block_until_ready(
        extend_vae_forward(x, eps, params)
    )

    # correctness check against a pure-JAX reference of the same math
    r_recon, (r_mu, r_lv), r_z = reference_forward(x, eps, params)
    assert recon.shape == (B, C, H, W)
    assert mu.shape == (B, LATENT) and logvar.shape == (B, LATENT) and z.shape == (B, LATENT)
    assert jnp.allclose(recon, r_recon, atol=1e-2, rtol=1e-2)
    assert jnp.allclose(mu, r_mu, atol=1e-2, rtol=1e-2)
    assert jnp.allclose(logvar, r_lv, atol=1e-2, rtol=1e-2)
    assert jnp.allclose(z, r_z, atol=1e-2, rtol=1e-2)

    print("KERNEL_OK")
</pallas_src>

<mosaic_0001>
module attributes {stable_mosaic.version = 11 : i64} {
  func.func @_vae_fused_kernel(%arg0: i32, %arg1: memref<8x1024xbf16, #tpu.memory_space<vmem>>, %arg2: memref<8x32xf32, #tpu.memory_space<vmem>>, %arg3: memref<1024x256xbf16, #tpu.memory_space<vmem>>, %arg4: memref<1x256xf32, #tpu.memory_space<vmem>>, %arg5: memref<256x64xbf16, #tpu.memory_space<vmem>>, %arg6: memref<1x64xf32, #tpu.memory_space<vmem>>, %arg7: memref<32x256xbf16, #tpu.memory_space<vmem>>, %arg8: memref<1x256xf32, #tpu.memory_space<vmem>>, %arg9: memref<256x1024xbf16, #tpu.memory_space<vmem>>, %arg10: memref<1x1024xf32, #tpu.memory_space<vmem>>, %arg11: memref<8x1024xf32, #tpu.memory_space<vmem>>, %arg12: memref<8x128xf32, #tpu.memory_space<vmem>>) attributes {dimension_semantics = [#tpu.dimension_semantics<parallel>], iteration_bounds = array<i64: 1>, scalar_prefetch = 0 : i64, scratch_operands = 0 : i64, tpu.core_type = #tpu.core_type<tc>, window_params = [{transform_indices = @transform_0, window_bounds = array<i64: 8, 1024>}, {transform_indices = @transform_1, window_bounds = array<i64: 8, 32>}, {pipeline_mode = #tpu.pipeline_mode<synchronous>, transform_indices = @transform_2, window_bounds = array<i64: 1024, 256>}, {pipeline_mode = #tpu.pipeline_mode<synchronous>, transform_indices = @transform_3, window_bounds = array<i64: 1, 256>}, {pipeline_mode = #tpu.pipeline_mode<synchronous>, transform_indices = @transform_4, window_bounds = array<i64: 256, 64>}, {pipeline_mode = #tpu.pipeline_mode<synchronous>, transform_indices = @transform_5, window_bounds = array<i64: 1, 64>}, {pipeline_mode = #tpu.pipeline_mode<synchronous>, transform_indices = @transform_6, window_bounds = array<i64: 32, 256>}, {pipeline_mode = #tpu.pipeline_mode<synchronous>, transform_indices = @transform_7, window_bounds = array<i64: 1, 256>}, {pipeline_mode = #tpu.pipeline_mode<synchronous>, transform_indices = @transform_8, window_bounds = array<i64: 256, 1024>}, {pipeline_mode = #tpu.pipeline_mode<synchronous>, transform_indices = @transform_9, window_bounds = array<i64: 1, 1024>}, {transform_indices = @transform_10, window_bounds = array<i64: 8, 1024>}, {transform_indices = @transform_11, window_bounds = array<i64: 8, 128>}]} {
    %c0 = arith.constant 0 : index
    %c0_0 = arith.constant 0 : index
    %0 = vector.load %arg1[%c0, %c0_0] : memref<8x1024xbf16, #tpu.memory_space<vmem>>, vector<8x1024xbf16>
    %c0_1 = arith.constant 0 : index
    %c0_2 = arith.constant 0 : index
    %1 = vector.load %arg3[%c0_1, %c0_2] : memref<1024x256xbf16, #tpu.memory_space<vmem>>, vector<1024x256xbf16>
    %cst = arith.constant dense<0.000000e+00> : vector<8x256xf32>
    %2 = tpu.matmul %0, %1, %cst {dimension_numbers = #tpu.dot_dimension_numbers<[1], [0], [0], [1], [0, 0, 1, 1], [], []>} : vector<8x1024xbf16>, vector<1024x256xbf16>, vector<8x256xf32> -> vector<8x256xf32>
    %c0_3 = arith.constant 0 : index
    %c0_4 = arith.constant 0 : index
    %3 = vector.load %arg4[%c0_3, %c0_4] : memref<1x256xf32, #tpu.memory_space<vmem>>, vector<1x256xf32>
    %4 = vector.broadcast %3 : vector<1x256xf32> to vector<8x256xf32>
    %5 = arith.addf %2, %4 : vector<8x256xf32>
    %cst_5 = arith.constant 0.000000e+00 : f32
    %6 = vector.broadcast %cst_5 : f32 to vector<8x256xf32>
    %7 = arith.maximumf %5, %6 : vector<8x256xf32>
    %8 = arith.truncf %7 : vector<8x256xf32> to vector<8x256xbf16>
    %c0_6 = arith.constant 0 : index
    %c0_7 = arith.constant 0 : index
    %9 = vector.load %arg5[%c0_6, %c0_7] : memref<256x64xbf16, #tpu.memory_space<vmem>>, vector<256x64xbf16>
    %cst_8 = arith.constant dense<0.000000e+00> : vector<8x64xf32>
    %10 = tpu.matmul %8, %9, %cst_8 {dimension_numbers = #tpu.dot_dimension_numbers<[1], [0], [0], [1], [0, 0, 1, 1], [], []>} : vector<8x256xbf16>, vector<256x64xbf16>, vector<8x64xf32> -> vector<8x64xf32>
    %c0_9 = arith.constant 0 : index
    %c0_10 = arith.constant 0 : index
    %11 = vector.load %arg6[%c0_9, %c0_10] : memref<1x64xf32, #tpu.memory_space<vmem>>, vector<1x64xf32>
    %12 = vector.broadcast %11 : vector<1x64xf32> to vector<8x64xf32>
    %13 = arith.addf %10, %12 : vector<8x64xf32>
    %14 = vector.extract_strided_slice %13 {offsets = [0, 0], sizes = [8, 32], strides = [1, 1]} : vector<8x64xf32> to vector<8x32xf32>
    %15 = vector.extract_strided_slice %13 {offsets = [0, 32], sizes = [8, 32], strides = [1, 1]} : vector<8x64xf32> to vector<8x32xf32>
    %cst_11 = arith.constant 5.000000e-01 : f32
    %16 = vector.broadcast %cst_11 : f32 to vector<8x32xf32>
    %17 = arith.mulf %16, %15 : vector<8x32xf32>
    %18 = math.exp %17 : vector<8x32xf32>
    %c0_12 = arith.constant 0 : index
    %c0_13 = arith.constant 0 : index
    %19 = vector.load %arg2[%c0_12, %c0_13] : memref<8x32xf32, #tpu.memory_space<vmem>>, vector<8x32xf32>
    %20 = arith.mulf %19, %18 : vector<8x32xf32>
    %21 = arith.addf %14, %20 : vector<8x32xf32>
    %22 = arith.truncf %21 : vector<8x32xf32> to vector<8x32xbf16>
    %c0_14 = arith.constant 0 : index
    %c0_15 = arith.constant 0 : index
    %23 = vector.load %arg7[%c0_14, %c0_15] : memref<32x256xbf16, #tpu.memory_space<vmem>>, vector<32x256xbf16>
    %cst_16 = arith.constant dense<0.000000e+00> : vector<8x256xf32>
    %24 = tpu.matmul %22, %23, %cst_16 {dimension_numbers = #tpu.dot_dimension_numbers<[1], [0], [0], [1], [0, 0, 1, 1], [], []>} : vector<8x32xbf16>, vector<32x256xbf16>, vector<8x256xf32> -> vector<8x256xf32>
    %c0_17 = arith.constant 0 : index
    %c0_18 = arith.constant 0 : index
    %25 = vector.load %arg8[%c0_17, %c0_18] : memref<1x256xf32, #tpu.memory_space<vmem>>, vector<1x256xf32>
    %26 = vector.broadcast %25 : vector<1x256xf32> to vector<8x256xf32>
    %27 = arith.addf %24, %26 : vector<8x256xf32>
    %cst_19 = arith.constant 0.000000e+00 : f32
    %28 = vector.broadcast %cst_19 : f32 to vector<8x256xf32>
    %29 = arith.maximumf %27, %28 : vector<8x256xf32>
    %30 = arith.truncf %29 : vector<8x256xf32> to vector<8x256xbf16>
    %c0_20 = arith.constant 0 : index
    %c0_21 = arith.constant 0 : index
    %31 = vector.load %arg9[%c0_20, %c0_21] : memref<256x1024xbf16, #tpu.memory_space<vmem>>, vector<256x1024xbf16>
    %cst_22 = arith.constant dense<0.000000e+00> : vector<8x1024xf32>
    %32 = tpu.matmul %30, %31, %cst_22 {dimension_numbers = #tpu.dot_dimension_numbers<[1], [0], [0], [1], [0, 0, 1, 1], [], []>} : vector<8x256xbf16>, vector<256x1024xbf16>, vector<8x1024xf32> -> vector<8x1024xf32>
    %c0_23 = arith.constant 0 : index
    %c0_24 = arith.constant 0 : index
    %33 = vector.load %arg10[%c0_23, %c0_24] : memref<1x1024xf32, #tpu.memory_space<vmem>>, vector<1x1024xf32>
    %34 = vector.broadcast %33 : vector<1x1024xf32> to vector<8x1024xf32>
    %35 = arith.addf %32, %34 : vector<8x1024xf32>
    %cst_25 = arith.constant 0.000000e+00 : f32
    %36 = vector.broadcast %cst_25 : f32 to vector<8x1024xf32>
    %37 = arith.subf %36, %35 : vector<8x1024xf32>
    %38 = math.exp %37 : vector<8x1024xf32>
    %cst_26 = arith.constant 1.000000e+00 : f32
    %39 = vector.broadcast %cst_26 : f32 to vector<8x1024xf32>
    %40 = arith.addf %39, %38 : vector<8x1024xf32>
    %41 = tpu.reciprocal %40 {approx = true} : vector<8x1024xf32> -> vector<8x1024xf32>
    %c0_27 = arith.constant 0 : index
    %c0_28 = arith.constant 0 : index
    %42 = vector.load %arg11[%c0_27, %c0_28] : memref<8x1024xf32, #tpu.memory_space<vmem>>, vector<8x1024xf32>
    tpu.vector_store %arg11[%c0_27, %c0_28], %41 {strides = array<i32>} : memref<8x1024xf32, #tpu.memory_space<vmem>>, vector<8x1024xf32>,
    %cst_29 = arith.constant 0.000000e+00 : f32
    %43 = vector.broadcast %cst_29 : f32 to vector<8x32xf32>
    %44 = tpu.concatenate %14, %15, %21, %43 in 1 : vector<8x32xf32>, vector<8x32xf32>, vector<8x32xf32>, vector<8x32xf32> -> vector<8x128xf32>
    %c0_30 = arith.constant 0 : index
    %c0_31 = arith.constant 0 : index
    %45 = vector.load %arg12[%c0_30, %c0_31] : memref<8x128xf32, #tpu.memory_space<vmem>>, vector<8x128xf32>
    tpu.vector_store %arg12[%c0_30, %c0_31], %44 {strides = array<i32>} : memref<8x128xf32, #tpu.memory_space<vmem>>, vector<8x128xf32>,
    return
  }
  func.func @transform_0(%arg0: i32) -> (i32, i32) {
    %c0_i32 = arith.constant 0 : i32
    %c0_i32_0 = arith.constant 0 : i32
    return %arg0, %c0_i32 : i32, i32
  }
  func.func @transform_1(%arg0: i32) -> (i32, i32) {
    %c0_i32 = arith.constant 0 : i32
    %c0_i32_0 = arith.constant 0 : i32
    return %arg0, %c0_i32 : i32, i32
  }
  func.func @transform_2(%arg0: i32) -> (i32, i32) {
    %c0_i32 = arith.constant 0 : i32
    %c0_i32_0 = arith.constant 0 : i32
    %c0_i32_1 = arith.constant 0 : i32
    return %c0_i32, %c0_i32_0 : i32, i32
  }
  func.func @transform_3(%arg0: i32) -> (i32, i32) {
    %c0_i32 = arith.constant 0 : i32
    %c0_i32_0 = arith.constant 0 : i32
    %c0_i32_1 = arith.constant 0 : i32
    return %c0_i32, %c0_i32_0 : i32, i32
  }
  func.func @transform_4(%arg0: i32) -> (i32, i32) {
    %c0_i32 = arith.constant 0 : i32
    %c0_i32_0 = arith.constant 0 : i32
    %c0_i32_1 = arith.constant 0 : i32
    return %c0_i32, %c0_i32_0 : i32, i32
  }
  func.func @transform_5(%arg0: i32) -> (i32, i32) {
    %c0_i32 = arith.constant 0 : i32
    %c0_i32_0 = arith.constant 0 : i32
    %c0_i32_1 = arith.constant 0 : i32
    return %c0_i32, %c0_i32_0 : i32, i32
  }
  func.func @transform_6(%arg0: i32) -> (i32, i32) {
    %c0_i32 = arith.constant 0 : i32
    %c0_i32_0 = arith.constant 0 : i32
    %c0_i32_1 = arith.constant 0 : i32
    return %c0_i32, %c0_i32_0 : i32, i32
  }
  func.func @transform_7(%arg0: i32) -> (i32, i32) {
    %c0_i32 = arith.constant 0 : i32
    %c0_i32_0 = arith.constant 0 : i32
    %c0_i32_1 = arith.constant 0 : i32
    return %c0_i32, %c0_i32_0 : i32, i32
  }
  func.func @transform_8(%arg0: i32) -> (i32, i32) {
    %c0_i32 = arith.constant 0 : i32
    %c0_i32_0 = arith.constant 0 : i32
    %c0_i32_1 = arith.constant 0 : i32
    return %c0_i32, %c0_i32_0 : i32, i32
  }
  func.func @transform_9(%arg0: i32) -> (i32, i32) {
    %c0_i32 = arith.constant 0 : i32
    %c0_i32_0 = arith.constant 0 : i32
    %c0_i32_1 = arith.constant 0 : i32
    return %c0_i32, %c0_i32_0 : i32, i32
  }
  func.func @transform_10(%arg0: i32) -> (i32, i32) {
    %c0_i32 = arith.constant 0 : i32
    %c0_i32_0 = arith.constant 0 : i32
    return %arg0, %c0_i32 : i32, i32
  }
  func.func @transform_11(%arg0: i32) -> (i32, i32) {
    %c0_i32 = arith.constant 0 : i32
    %c0_i32_0 = arith.constant 0 : i32
    return %arg0, %c0_i32 : i32, i32
  }
}

</mosaic_0001>

<llo_original>
// kernel: tpu_custom_call.1
$region0: #{tpu_custom_call.1}
  #allocation0 [shape = 'u32[]', space=smem, size = 0x4, offset = 0x4, fixed_abs, tag = 'smem constant byte address 0x4 - core index']
  #allocation1 [shape = 'u32[144,128]{1,0:T(1,128)}', space=vmem, size = 0x12000, scoped, tag = 'internal scratch']
  %s0 = inlined_call_operand.vmem [shape: bf16[8,1024], index: 0, kind: input, shape index: {}]
  %s1 = inlined_call_operand.vmem [shape: f32[8,32], index: 1, kind: input, shape index: {}]
  %s2 = inlined_call_operand.hbm [shape: bf16[1024,256], index: 2, kind: input, shape index: {}]
  %s3 = inlined_call_operand.vmem [shape: f32[1,256], index: 3, kind: input, shape index: {}]
  %s4 = inlined_call_operand.vmem [shape: bf16[256,64], index: 4, kind: input, shape index: {}]
  %s5 = inlined_call_operand.vmem [shape: f32[1,64], index: 5, kind: input, shape index: {}]
  %s6 = inlined_call_operand.vmem [shape: bf16[32,256], index: 6, kind: input, shape index: {}]
  %s7 = inlined_call_operand.vmem [shape: f32[1,256], index: 7, kind: input, shape index: {}]
  %s8 = inlined_call_operand.hbm [shape: bf16[256,1024], index: 8, kind: input, shape index: {}]
  %s9 = inlined_call_operand.vmem [shape: f32[1,1024], index: 9, kind: input, shape index: {}]
  %s10 = inlined_call_operand.hbm [shape: f32[8,1024], index: 10, kind: output, shape index: {0}]
  %s11 = inlined_call_operand.hbm [shape: f32[8,128], index: 11, kind: output, shape index: {1}]
  %12 = xla_tuple %s10, %s11
  %s13 = sld [smem:[#allocation0]]
  $region66: #{tpu_custom_call.1} parent=0
    _
  %s15 = ssub.s32 1, %s13
  %s16 = scalar_select 0, %s15, %s13
  $region1: #{tpu_custom_call.1} parent=0
    #allocation2 [shape = 'u8[524288]{0}', space=vmem, size = 0x80000, scoped, tag = 'input window, operand 2, single buffered']
    #allocation3 [shape = 's32[1]{0}', space=sflag, size = 0x4, scoped, tag = 'scoped memory for tpu_custom_call.1']
    #allocation4 [shape = 's32[1]{0}', space=sflag, size = 0x4, scoped, tag = 'scoped memory for tpu_custom_call.1']
    #allocation5 [shape = 'u8[524288]{0}', space=vmem, size = 0x80000, scoped, tag = 'input window, operand 8, single buffered']
    #allocation6 [shape = 's32[1]{0}', space=sflag, size = 0x4, scoped, tag = 'scoped memory for tpu_custom_call.1']
    #allocation7 [shape = 'u8[32768]{0}', space=vmem, size = 0x8000, scoped, tag = 'output window, operand 0, single buffered']
    #allocation8 [shape = 'u8[4096]{0}', space=vmem, size = 0x1000, scoped, tag = 'output window, operand 1, single buffered']
    #allocation9 [shape = 's32[1]{0}', space=sflag, size = 0x4, scoped, tag = 'scoped memory for tpu_custom_call.1']
    %17 = vsyncpa [#allocation3], 0
    %18 = vsyncpa [#allocation6], 0
    %19 = vsyncpa [#allocation4], 0
    %20 = vsyncpa [#allocation9], 0
    // Predicated region
    $region2: #{tpu_custom_call.1} parent=1 // pred_check
      _
    $region3: #{tpu_custom_call.1} parent=1 // pred_check_branch
      %22 = sbr.rel (0) target = $region5
    $region4: #{tpu_custom_call.1} parent=1 // pred_region
      _
    $region5: #{tpu_custom_call.1} parent=1 // pred_fallthru
      _
    // Predicated region
    $region6: #{tpu_custom_call.1} parent=1 // pred_check
      _
    $region7: #{tpu_custom_call.1} parent=1 // pred_check_branch
      %24 = sbr.rel (0) target = $region9
    $region8: #{tpu_custom_call.1} parent=1 // pred_region
      _
    $region9: #{tpu_custom_call.1} parent=1 // pred_fallthru
      _
    // Predicated region
    $region10: #{tpu_custom_call.1} parent=1 // pred_check
      _
    $region11: #{tpu_custom_call.1} parent=1 // pred_check_branch
      %26 = sbr.rel (0) target = $region13
    $region12: #{tpu_custom_call.1} parent=1 // pred_region
      %s28 = ssub.s32 16384, 16384
      %29 = vsyncadd [#allocation3], %s28
      %s30 = sshll.u32 [#allocation2], 4
      %s31 = int_to_ptr.vmem [resolvable:$true] %s30
      %36 = dma.hbm_to_vmem [thread:$0]  %s2, 16384, %s31, [#allocation3], 128, 128, 8
    $region13: #{tpu_custom_call.1} parent=1 // pred_fallthru
      _
    // Predicated region
    $region14: #{tpu_custom_call.1} parent=1 // pred_check
      _
    $region15: #{tpu_custom_call.1} parent=1 // pred_check_branch
      %38 = sbr.rel (0) target = $region17
    $region16: #{tpu_custom_call.1} parent=1 // pred_region
      _
    $region17: #{tpu_custom_call.1} parent=1 // pred_fallthru
      _
    // Predicated region
    $region18: #{tpu_custom_call.1} parent=1 // pred_check
      _
    $region19: #{tpu_custom_call.1} parent=1 // pred_check_branch
      %40 = sbr.rel (0) target = $region21
    $region20: #{tpu_custom_call.1} parent=1 // pred_region
      _
    $region21: #{tpu_custom_call.1} parent=1 // pred_fallthru
      _
    // Predicated region
    $region22: #{tpu_custom_call.1} parent=1 // pred_check
      _
    $region23: #{tpu_custom_call.1} parent=1 // pred_check_branch
      %42 = sbr.rel (0) target = $region25
    $region24: #{tpu_custom_call.1} parent=1 // pred_region
      _
    $region25: #{tpu_custom_call.1} parent=1 // pred_fallthru
      _
    // Predicated region
    $region26: #{tpu_custom_call.1} parent=1 // pred_check
      _
    $region27: #{tpu_custom_call.1} parent=1 // pred_check_branch
      %44 = sbr.rel (0) target = $region29
    $region28: #{tpu_custom_call.1} parent=1 // pred_region
      _
    $region29: #{tpu_custom_call.1} parent=1 // pred_fallthru
      _
    // Predicated region
    $region30: #{tpu_custom_call.1} parent=1 // pred_check
      _
    $region31: #{tpu_custom_call.1} parent=1 // pred_check_branch
      %46 = sbr.rel (0) target = $region33
    $region32: #{tpu_custom_call.1} parent=1 // pred_region
      _
    $region33: #{tpu_custom_call.1} parent=1 // pred_fallthru
      _
    // Predicated region
    $region34: #{tpu_custom_call.1} parent=1 // pred_check
      _
    $region35: #{tpu_custom_call.1} parent=1 // pred_check_branch
      %48 = sbr.rel (0) target = $region37
    $region36: #{tpu_custom_call.1} parent=1 // pred_region
      %s50 = ssub.s32 16384, 16384
      %51 = vsyncadd [#allocation6], %s50
      %s52 = sshll.u32 [#allocation5], 4
      %s53 = int_to_ptr.vmem [resolvable:$true] %s52
      %58 = dma.hbm_to_vmem [thread:$0]  %s8, 16384, %s53, [#allocation6], 512, 512, 32
    $region37: #{tpu_custom_call.1} parent=1 // pred_fallthru
      _
    // Predicated region
    $region38: #{tpu_custom_call.1} parent=1 // pred_check
      _
    $region39: #{tpu_custom_call.1} parent=1 // pred_check_branch
      %60 = sbr.rel (0) target = $region41
    $region40: #{tpu_custom_call.1} parent=1 // pred_region
      _
    $region41: #{tpu_custom_call.1} parent=1 // pred_fallthru
      _
    // Predicated region
    $region42: #{tpu_custom_call.1} parent=1 // pred_check
      _
    $region43: #{tpu_custom_call.1} parent=1 // pred_check_branch
      %62 = sbr.rel (0) target = $region45
    $region44: #{tpu_custom_call.1} parent=1 // pred_region
      %63 = dma.done [#allocation3], 16384
    $region45: #{tpu_custom_call.1} parent=1 // pred_fallthru
      _
    // Predicated region
    $region46: #{tpu_custom_call.1} parent=1 // pred_check
      _
    $region47: #{tpu_custom_call.1} parent=1 // pred_check_branch
      %65 = sbr.rel (0) target = $region49
    $region48: #{tpu_custom_call.1} parent=1 // pred_region
      %66 = dma.done [#allocation6], 16384
    $region49: #{tpu_custom_call.1} parent=1 // pred_fallthru
      _
    %v68 = vld [vmem:[%s0] sm:$0xff]
    %v69 = vld [vmem:[%s0 + $0x8] sm:$0xff]
    %v70 = vld [vmem:[%s0 + $0x10] sm:$0xff]
    %v71 = vld [vmem:[%s0 + $0x18] sm:$0xff]
    %v72 = vld [vmem:[#allocation2] sm:$0xff]
    %v73 = vld [vmem:[#allocation2 + $0x8] sm:$0xff]
    %v74 = vld [vmem:[#allocation2 + $0x10] sm:$0xff]
    %v75 = vld [vmem:[#allocation2 + $0x18] sm:$0xff]
    %v76 = vld [vmem:[#allocation2 + $0x20] sm:$0xff]
    %v77 = vld [vmem:[#allocation2 + $0x28] sm:$0xff]
    %v78 = vld [vmem:[#allocation2 + $0x30] sm:$0xff]
    %v79 = vld [vmem:[#allocation2 + $0x38] sm:$0xff]
    %v80 = vld [vmem:[#allocation2 + $0x40] sm:$0xff]
    %v81 = vld [vmem:[#allocation2 + $0x48] sm:$0xff]
    %v82 = vld [vmem:[#allocation2 + $0x50] sm:$0xff]
    %v83 = vld [vmem:[#allocation2 + $0x58] sm:$0xff]
    %v84 = vld [vmem:[#allocation2 + $0x60] sm:$0xff]
    %v85 = vld [vmem:[#allocation2 + $0x68] sm:$0xff]
    %v86 = vld [vmem:[#allocation2 + $0x70] sm:$0xff]
    %v87 = vld [vmem:[#allocation2 + $0x78] sm:$0xff]
    %v88 = vld [vmem:[#allocation2 + $0x80] sm:$0xff]
    %v89 = vld [vmem:[#allocation2 + $0x88] sm:$0xff]
    %v90 = vld [vmem:[#allocation2 + $0x90] sm:$0xff]
    %v91 = vld [vmem:[#allocation2 + $0x98] sm:$0xff]
    %v92 = vld [vmem:[#allocation2 + $0xa0] sm:$0xff]
    %v93 = vld [vmem:[#allocation2 + $0xa8] sm:$0xff]
    %v94 = vld [vmem:[#allocation2 + $0xb0] sm:$0xff]
    %v95 = vld [vmem:[#allocation2 + $0xb8] sm:$0xff]
    %v96 = vld [vmem:[#allocation2 + $0xc0] sm:$0xff]
    %v97 = vld [vmem:[#allocation2 + $0xc8] sm:$0xff]
    %v98 = vld [vmem:[#allocation2 + $0xd0] sm:$0xff]
    %v99 = vld [vmem:[#allocation2 + $0xd8] sm:$0xff]
    %v100 = vld [vmem:[#allocation2 + $0xe0] sm:$0xff]
    %v101 = vld [vmem:[#allocation2 + $0xe8] sm:$0xff]
    %v102 = vld [vmem:[#allocation2 + $0xf0] sm:$0xff]
    %v103 = vld [vmem:[#allocation2 + $0xf8] sm:$0xff]
    %v104 = vld [vmem:[#allocation2 + $0x100] sm:$0xff]
    %v105 = vld [vmem:[#allocation2 + $0x108] sm:$0xff]
    %v106 = vld [vmem:[#allocation2 + $0x110] sm:$0xff]
    %v107 = vld [vmem:[#allocation2 + $0x118] sm:$0xff]
    %v108 = vld [vmem:[#allocation2 + $0x120] sm:$0xff]
    %v109 = vld [vmem:[#allocation2 + $0x128] sm:$0xff]
    %v110 = vld [vmem:[#allocation2 + $0x130] sm:$0xff]
    %v111 = vld [vmem:[#allocation2 + $0x138] sm:$0xff]
    %v112 = vld [vmem:[#allocation2 + $0x140] sm:$0xff]
    %v113 = vld [vmem:[#allocation2 + $0x148] sm:$0xff]
    %v114 = vld [vmem:[#allocation2 + $0x150] sm:$0xff]
    %v115 = vld [vmem:[#allocation2 + $0x158] sm:$0xff]
    %v116 = vld [vmem:[#allocation2 + $0x160] sm:$0xff]
    %v117 = vld [vmem:[#allocation2 + $0x168] sm:$0xff]
    %v118 = vld [vmem:[#allocation2 + $0x170] sm:$0xff]
    %v119 = vld [vmem:[#allocation2 + $0x178] sm:$0xff]
    %v120 = vld [vmem:[#allocation2 + $0x180] sm:$0xff]
    %v121 = vld [vmem:[#allocation2 + $0x188] sm:$0xff]
    %v122 = vld [vmem:[#allocation2 + $0x190] sm:$0xff]
    %v123 = vld [vmem:[#allocation2 + $0x198] sm:$0xff]
    %v124 = vld [vmem:[#allocation2 + $0x1a0] sm:$0xff]
    %v125 = vld [vmem:[#allocation2 + $0x1a8] sm:$0xff]
    %v126 = vld [vmem:[#allocation2 + $0x1b0] sm:$0xff]
    %v127 = vld [vmem:[#allocation2 + $0x1b8] sm:$0xff]
    %v128 = vld [vmem:[#allocation2 + $0x1c0] sm:$0xff]
    %v129 = vld [vmem:[#allocation2 + $0x1c8] sm:$0xff]
    %v130 = vld [vmem:[#allocation2 + $0x1d0] sm:$0xff]
    %v131 = vld [vmem:[#allocation2 + $0x1d8] sm:$0xff]
    %v132 = vld [vmem:[#allocation2 + $0x1e0] sm:$0xff]
    %v133 = vld [vmem:[#allocation2 + $0x1e8] sm:$0xff]
    %v134 = vld [vmem:[#allocation2 + $0x1f0] sm:$0xff]
    %v135 = vld [vmem:[#allocation2 + $0x1f8] sm:$0xff]
    %v136 = vld [vmem:[#allocation2 + $0x200] sm:$0xff]
    %v137 = vld [vmem:[#allocation2 + $0x208] sm:$0xff]
    %v138 = vld [vmem:[#allocation2 + $0x210] sm:$0xff]
    %v139 = vld [vmem:[#allocation2 + $0x218] sm:$0xff]
    %v140 = vld [vmem:[#allocation2 + $0x220] sm:$0xff]
    %v141 = vld [vmem:[#allocation2 + $0x228] sm:$0xff]
    %v142 = vld [vmem:[#allocation2 + $0x230] sm:$0xff]
    %v143 = vld [vmem:[#allocation2 + $0x238] sm:$0xff]
    %v144 = vld [vmem:[#allocation2 + $0x240] sm:$0xff]
    %v145 = vld [vmem:[#allocation2 + $0x248] sm:$0xff]
    %v146 = vld [vmem:[#allocation2 + $0x250] sm:$0xff]
    %v147 = vld [vmem:[#allocation2 + $0x258] sm:$0xff]
    %v148 = vld [vmem:[#allocation2 + $0x260] sm:$0xff]
    %v149 = vld [vmem:[#allocation2 + $0x268] sm:$0xff]
    %v150 = vld [vmem:[#allocation2 + $0x270] sm:$0xff]
    %v151 = vld [vmem:[#allocation2 + $0x278] sm:$0xff]
    %v152 = vld [vmem:[#allocation2 + $0x280] sm:$0xff]
    %v153 = vld [vmem:[#allocation2 + $0x288] sm:$0xff]
    %v154 = vld [vmem:[#allocation2 + $0x290] sm:$0xff]
    %v155 = vld [vmem:[#allocation2 + $0x298] sm:$0xff]
    %v156 = vld [vmem:[#allocation2 + $0x2a0] sm:$0xff]
    %v157 = vld [vmem:[#allocation2 + $0x2a8] sm:$0xff]
    %v158 = vld [vmem:[#allocation2 + $0x2b0] sm:$0xff]
    %v159 = vld [vmem:[#allocation2 + $0x2b8] sm:$0xff]
    %v160 = vld [vmem:[#allocation2 + $0x2c0] sm:$0xff]
    %v161 = vld [vmem:[#allocation2 + $0x2c8] sm:$0xff]
    %v162 = vld [vmem:[#allocation2 + $0x2d0] sm:$0xff]
    %v163 = vld [vmem:[#allocation2 + $0x2d8] sm:$0xff]
    %v164 = vld [vmem:[#allocation2 + $0x2e0] sm:$0xff]
    %v165 = vld [vmem:[#allocation2 + $0x2e8] sm:$0xff]
    %v166 = vld [vmem:[#allocation2 + $0x2f0] sm:$0xff]
    %v167 = vld [vmem:[#allocation2 + $0x2f8] sm:$0xff]
    %v168 = vld [vmem:[#allocation2 + $0x300] sm:$0xff]
    %v169 = vld [vmem:[#allocation2 + $0x308] sm:$0xff]
    %v170 = vld [vmem:[#allocation2 + $0x310] sm:$0xff]
    %v171 = vld [vmem:[#allocation2 + $0x318] sm:$0xff]
    %v172 = vld [vmem:[#allocation2 + $0x320] sm:$0xff]
    %v173 = vld [vmem:[#allocation2 + $0x328] sm:$0xff]
    %v174 = vld [vmem:[#allocation2 + $0x330] sm:$0xff]
    %v175 = vld [vmem:[#allocation2 + $0x338] sm:$0xff]
    %v176 = vld [vmem:[#allocation2 + $0x340] sm:$0xff]
    %v177 = vld [vmem:[#allocation2 + $0x348] sm:$0xff]
    %v178 = vld [vmem:[#allocation2 + $0x350] sm:$0xff]
    %v179 = vld [vmem:[#allocation2 + $0x358] sm:$0xff]
    %v180 = vld [vmem:[#allocation2 + $0x360] sm:$0xff]
    %v181 = vld [vmem:[#allocation2 + $0x368] sm:$0xff]
    %v182 = vld [vmem:[#allocation2 + $0x370] sm:$0xff]
    %v183 = vld [vmem:[#allocation2 + $0x378] sm:$0xff]
    %v184 = vld [vmem:[#allocation2 + $0x380] sm:$0xff]
    %v185 = vld [vmem:[#allocation2 + $0x388] sm:$0xff]
    %v186 = vld [vmem:[#allocation2 + $0x390] sm:$0xff]
    %v187 = vld [vmem:[#allocation2 + $0x398] sm:$0xff]
    %v188 = vld [vmem:[#allocation2 + $0x3a0] sm:$0xff]
    %v189 = vld [vmem:[#allocation2 + $0x3a8] sm:$0xff]
    %v190 = vld [vmem:[#allocation2 + $0x3b0] sm:$0xff]
    %v191 = vld [vmem:[#allocation2 + $0x3b8] sm:$0xff]
    %v192 = vld [vmem:[#allocation2 + $0x3c0] sm:$0xff]
    %v193 = vld [vmem:[#allocation2 + $0x3c8] sm:$0xff]
    %v194 = vld [vmem:[#allocation2 + $0x3d0] sm:$0xff]
    %v195 = vld [vmem:[#allocation2 + $0x3d8] sm:$0xff]
    %v196 = vld [vmem:[#allocation2 + $0x3e0] sm:$0xff]
    %v197 = vld [vmem:[#allocation2 + $0x3e8] sm:$0xff]
    %v198 = vld [vmem:[#allocation2 + $0x3f0] sm:$0xff]
    %v199 = vld [vmem:[#allocation2 + $0x3f8] sm:$0xff]
    %v200 = vld [vmem:[%s3] sm:$0x3]
    %v202 = vlaneseq
    %v203 = vshrl.u32 %v202, 7
    %v204 = vsub.s32 0, %v203
    %v205 = vrot.slane %v200, %v204
    %v206 = vlaneseq
    %v207 = vshrl.u32 %v206, 7
    %v208 = vsub.s32 1, %v207
    %v209 = vrot.slane %v200, %v208
    %v216 = vunpack.c.l.b16 %v68
    %v217 = vunpack.c.h.b16 %v68
    %v218 = vunpack.c.l.b16 %v69
    %v219 = vunpack.c.h.b16 %v69
    %v220 = vunpack.c.l.b16 %v70
    %v221 = vunpack.c.h.b16 %v70
    %v222 = vunpack.c.l.b16 %v71
    %v223 = vunpack.c.h.b16 %v71
    %v224 = vpack.c.b16 %v216, %v216
    %v225 = vpack.c.b16 %v217, %v217
    %v226 = vpack.c.b16 %v218, %v218
    %v227 = vpack.c.b16 %v219, %v219
    %v228 = vpack.c.b16 %v220, %v220
    %v229 = vpack.c.b16 %v221, %v221
    %v230 = vpack.c.b16 %v222, %v222
    %v231 = vpack.c.b16 %v223, %v223
    %v368 = vunpack.c.l.b16 %v72
    %v369 = vunpack.c.h.b16 %v72
    %v370 = vunpack.c.l.b16 %v73
    %v371 = vunpack.c.h.b16 %v73
    %v372 = vunpack.c.l.b16 %v74
    %v373 = vunpack.c.h.b16 %v74
    %v374 = vunpack.c.l.b16 %v75
    %v375 = vunpack.c.h.b16 %v75
    %v376 = vunpack.c.l.b16 %v76
    %v377 = vunpack.c.h.b16 %v76
    %v378 = vunpack.c.l.b16 %v77
    %v379 = vunpack.c.h.b16 %v77
    %v380 = vunpack.c.l.b16 %v78
    %v381 = vunpack.c.h.b16 %v78
    %v382 = vunpack.c.l.b16 %v79
    %v383 = vunpack.c.h.b16 %v79
    %v384 = vunpack.c.l.b16 %v80
    %v385 = vunpack.c.h.b16 %v80
    %v386 = vunpack.c.l.b16 %v81
    %v387 = vunpack.c.h.b16 %v81
    %v388 = vunpack.c.l.b16 %v82
    %v389 = vunpack.c.h.b16 %v82
    %v390 = vunpack.c.l.b16 %v83
    %v391 = vunpack.c.h.b16 %v83
    %v392 = vunpack.c.l.b16 %v84
    %v393 = vunpack.c.h.b16 %v84
    %v394 = vunpack.c.l.b16 %v85
    %v395 = vunpack.c.h.b16 %v85
    %v396 = vunpack.c.l.b16 %v86
    %v397 = vunpack.c.h.b16 %v86
    %v398 = vunpack.c.l.b16 %v87
    %v399 = vunpack.c.h.b16 %v87
    %v400 = vunpack.c.l.b16 %v88
    %v401 = vunpack.c.h.b16 %v88
    %v402 = vunpack.c.l.b16 %v89
    %v403 = vunpack.c.h.b16 %v89
    %v404 = vunpack.c.l.b16 %v90
    %v405 = vunpack.c.h.b16 %v90
    %v406 = vunpack.c.l.b16 %v91
    %v407 = vunpack.c.h.b16 %v91
    %v408 = vunpack.c.l.b16 %v92
    %v409 = vunpack.c.h.b16 %v92
    %v410 = vunpack.c.l.b16 %v93
    %v411 = vunpack.c.h.b16 %v93
    %v412 = vunpack.c.l.b16 %v94
    %v413 = vunpack.c.h.b16 %v94
    %v414 = vunpack.c.l.b16 %v95
    %v415 = vunpack.c.h.b16 %v95
    %v416 = vunpack.c.l.b16 %v96
    %v417 = vunpack.c.h.b16 %v96
    %v418 = vunpack.c.l.b16 %v97
    %v419 = vunpack.c.h.b16 %v97
    %v420 = vunpack.c.l.b16 %v98
    %v421 = vunpack.c.h.b16 %v98
    %v422 = vunpack.c.l.b16 %v99
    %v423 = vunpack.c.h.b16 %v99
    %v424 = vunpack.c.l.b16 %v100
    %v425 = vunpack.c.h.b16 %v100
    %v426 = vunpack.c.l.b16 %v101
    %v427 = vunpack.c.h.b16 %v101
    %v428 = vunpack.c.l.b16 %v102
    %v429 = vunpack.c.h.b16 %v102
    %v430 = vunpack.c.l.b16 %v103
    %v431 = vunpack.c.h.b16 %v103
    %v432 = vunpack.c.l.b16 %v104
    %v433 = vunpack.c.h.b16 %v104
    %v434 = vunpack.c.l.b16 %v105
    %v435 = vunpack.c.h.b16 %v105
    %v436 = vunpack.c.l.b16 %v106
    %v437 = vunpack.c.h.b16 %v106
    %v438 = vunpack.c.l.b16 %v107
    %v439 = vunpack.c.h.b16 %v107
    %v440 = vunpack.c.l.b16 %v108
    %v441 = vunpack.c.h.b16 %v108
    %v442 = vunpack.c.l.b16 %v109
    %v443 = vunpack.c.h.b16 %v109
    %v444 = vunpack.c.l.b16 %v110
    %v445 = vunpack.c.h.b16 %v110
    %v446 = vunpack.c.l.b16 %v111
    %v447 = vunpack.c.h.b16 %v111
    %v448 = vunpack.c.l.b16 %v112
    %v449 = vunpack.c.h.b16 %v112
    %v450 = vunpack.c.l.b16 %v113
    %v451 = vunpack.c.h.b16 %v113
    %v452 = vunpack.c.l.b16 %v114
    %v453 = vunpack.c.h.b16 %v114
    %v454 = vunpack.c.l.b16 %v115
    %v455 = vunpack.c.h.b16 %v115
    %v456 = vunpack.c.l.b16 %v116
    %v457 = vunpack.c.h.b16 %v116
    %v458 = vunpack.c.l.b16 %v117
    %v459 = vunpack.c.h.b16 %v117
    %v460 = vunpack.c.l.b16 %v118
    %v461 = vunpack.c.h.b16 %v118
    %v462 = vunpack.c.l.b16 %v119
    %v463 = vunpack.c.h.b16 %v119
    %v464 = vunpack.c.l.b16 %v120
    %v465 = vunpack.c.h.b16 %v120
    %v466 = vunpack.c.l.b16 %v121
    %v467 = vunpack.c.h.b16 %v121
    %v468 = vunpack.c.l.b16 %v122
    %v469 = vunpack.c.h.b16 %v122
    %v470 = vunpack.c.l.b16 %v123
    %v471 = vunpack.c.h.b16 %v123
    %v472 = vunpack.c.l.b16 %v124
    %v473 = vunpack.c.h.b16 %v124
    %v474 = vunpack.c.l.b16 %v125
    %v475 = vunpack.c.h.b16 %v125
    %v476 = vunpack.c.l.b16 %v126
    %v477 = vunpack.c.h.b16 %v126
    %v478 = vunpack.c.l.b16 %v127
    %v479 = vunpack.c.h.b16 %v127
    %v480 = vunpack.c.l.b16 %v128
    %v481 = vunpack.c.h.b16 %v128
    %v482 = vunpack.c.l.b16 %v129
    %v483 = vunpack.c.h.b16 %v129
    %v484 = vunpack.c.l.b16 %v130
    %v485 = vunpack.c.h.b16 %v130
    %v486 = vunpack.c.l.b16 %v131
    %v487 = vunpack.c.h.b16 %v131
    %v488 = vunpack.c.l.b16 %v132
    %v489 = vunpack.c.h.b16 %v132
    %v490 = vunpack.c.l.b16 %v133
    %v491 = vunpack.c.h.b16 %v133
    %v492 = vunpack.c.l.b16 %v134
    %v493 = vunpack.c.h.b16 %v134
    %v494 = vunpack.c.l.b16 %v135
    %v495 = vunpack.c.h.b16 %v135
    %v496 = vunpack.c.l.b16 %v136
    %v497 = vunpack.c.h.b16 %v136
    %v498 = vunpack.c.l.b16 %v137
    %v499 = vunpack.c.h.b16 %v137
    %v500 = vunpack.c.l.b16 %v138
    %v501 = vunpack.c.h.b16 %v138
    %v502 = vunpack.c.l.b16 %v139
    %v503 = vunpack.c.h.b16 %v139
    %v504 = vunpack.c.l.b16 %v140
    %v505 = vunpack.c.h.b16 %v140
    %v506 = vunpack.c.l.b16 %v141
    %v507 = vunpack.c.h.b16 %v141
    %v508 = vunpack.c.l.b16 %v142
    %v509 = vunpack.c.h.b16 %v142
    %v510 = vunpack.c.l.b16 %v143
    %v511 = vunpack.c.h.b16 %v143
    %v512 = vunpack.c.l.b16 %v144
    %v513 = vunpack.c.h.b16 %v144
    %v514 = vunpack.c.l.b16 %v145
    %v515 = vunpack.c.h.b16 %v145
    %v516 = vunpack.c.l.b16 %v146
    %v517 = vunpack.c.h.b16 %v146
    %v518 = vunpack.c.l.b16 %v147
    %v519 = vunpack.c.h.b16 %v147
    %v520 = vunpack.c.l.b16 %v148
    %v521 = vunpack.c.h.b16 %v148
    %v522 = vunpack.c.l.b16 %v149
    %v523 = vunpack.c.h.b16 %v149
    %v524 = vunpack.c.l.b16 %v150
    %v525 = vunpack.c.h.b16 %v150
    %v526 = vunpack.c.l.b16 %v151
    %v527 = vunpack.c.h.b16 %v151
    %v528 = vunpack.c.l.b16 %v152
    %v529 = vunpack.c.h.b16 %v152
    %v530 = vunpack.c.l.b16 %v153
    %v531 = vunpack.c.h.b16 %v153
    %v532 = vunpack.c.l.b16 %v154
    %v533 = vunpack.c.h.b16 %v154
    %v534 = vunpack.c.l.b16 %v155
    %v535 = vunpack.c.h.b16 %v155
    %v536 = vunpack.c.l.b16 %v156
    %v537 = vunpack.c.h.b16 %v156
    %v538 = vunpack.c.l.b16 %v157
    %v539 = vunpack.c.h.b16 %v157
    %v540 = vunpack.c.l.b16 %v158
    %v541 = vunpack.c.h.b16 %v158
    %v542 = vunpack.c.l.b16 %v159
    %v543 = vunpack.c.h.b16 %v159
    %v544 = vunpack.c.l.b16 %v160
    %v545 = vunpack.c.h.b16 %v160
    %v546 = vunpack.c.l.b16 %v161
    %v547 = vunpack.c.h.b16 %v161
    %v548 = vunpack.c.l.b16 %v162
    %v549 = vunpack.c.h.b16 %v162
    %v550 = vunpack.c.l.b16 %v163
    %v551 = vunpack.c.h.b16 %v163
    %v552 = vunpack.c.l.b16 %v164
    %v553 = vunpack.c.h.b16 %v164
    %v554 = vunpack.c.l.b16 %v165
    %v555 = vunpack.c.h.b16 %v165
    %v556 = vunpack.c.l.b16 %v166
    %v557 = vunpack.c.h.b16 %v166
    %v558 = vunpack.c.l.b16 %v167
    %v559 = vunpack.c.h.b16 %v167
    %v560 = vunpack.c.l.b16 %v168
    %v561 = vunpack.c.h.b16 %v168
    %v562 = vunpack.c.l.b16 %v169
    %v563 = vunpack.c.h.b16 %v169
    %v564 = vunpack.c.l.b16 %v170
    %v565 = vunpack.c.h.b16 %v170
    %v566 = vunpack.c.l.b16 %v171
    %v567 = vunpack.c.h.b16 %v171
    %v568 = vunpack.c.l.b16 %v172
    %v569 = vunpack.c.h.b16 %v172
    %v570 = vunpack.c.l.b16 %v173
    %v571 = vunpack.c.h.b16 %v173
    %v572 = vunpack.c.l.b16 %v174
    %v573 = vunpack.c.h.b16 %v174
    %v574 = vunpack.c.l.b16 %v175
    %v575 = vunpack.c.h.b16 %v175
    %v576 = vunpack.c.l.b16 %v176
    %v577 = vunpack.c.h.b16 %v176
    %v578 = vunpack.c.l.b16 %v177
    %v579 = vunpack.c.h.b16 %v177
    %v580 = vunpack.c.l.b16 %v178
    %v581 = vunpack.c.h.b16 %v178
    %v582 = vunpack.c.l.b16 %v179
    %v583 = vunpack.c.h.b16 %v179
    %v584 = vunpack.c.l.b16 %v180
    %v585 = vunpack.c.h.b16 %v180
    %v586 = vunpack.c.l.b16 %v181
    %v587 = vunpack.c.h.b16 %v181
    %v588 = vunpack.c.l.b16 %v182
    %v589 = vunpack.c.h.b16 %v182
    %v590 = vunpack.c.l.b16 %v183
    %v591 = vunpack.c.h.b16 %v183
    %v592 = vunpack.c.l.b16 %v184
    %v593 = vunpack.c.h.b16 %v184
    %v594 = vunpack.c.l.b16 %v185
    %v595 = vunpack.c.h.b16 %v185
    %v596 = vunpack.c.l.b16 %v186
    %v597 = vunpack.c.h.b16 %v186
    %v598 = vunpack.c.l.b16 %v187
    %v599 = vunpack.c.h.b16 %v187
    %v600 = vunpack.c.l.b16 %v188
    %v601 = vunpack.c.h.b16 %v188
    %v602 = vunpack.c.l.b16 %v189
    %v603 = vunpack.c.h.b16 %v189
    %v604 = vunpack.c.l.b16 %v190
    %v605 = vunpack.c.h.b16 %v190
    %v606 = vunpack.c.l.b16 %v191
    %v607 = vunpack.c.h.b16 %v191
    %v608 = vunpack.c.l.b16 %v192
    %v609 = vunpack.c.h.b16 %v192
    %v610 = vunpack.c.l.b16 %v193
    %v611 = vunpack.c.h.b16 %v193
    %v612 = vunpack.c.l.b16 %v194
    %v613 = vunpack.c.h.b16 %v194
    %v614 = vunpack.c.l.b16 %v195
    %v615 = vunpack.c.h.b16 %v195
    %v616 = vunpack.c.l.b16 %v196
    %v617 = vunpack.c.h.b16 %v196
    %v618 = vunpack.c.l.b16 %v197
    %v619 = vunpack.c.h.b16 %v197
    %v620 = vunpack.c.l.b16 %v198
    %v621 = vunpack.c.h.b16 %v198
    %v622 = vunpack.c.l.b16 %v199
    %v623 = vunpack.c.h.b16 %v199
    %v624 = vpack.c.b16 %v370, %v368
    %v625 = vpack.c.b16 %v371, %v369
    %v626 = vpack.c.b16 %v374, %v372
    %v627 = vpack.c.b16 %v375, %v373
    %v628 = vpack.c.b16 %v378, %v376
    %v629 = vpack.c.b16 %v379, %v377
    %v630 = vpack.c.b16 %v382, %v380
    %v631 = vpack.c.b16 %v383, %v381
    %v632 = vpack.c.b16 %v386, %v384
    %v633 = vpack.c.b16 %v387, %v385
    %v634 = vpack.c.b16 %v390, %v388
    %v635 = vpack.c.b16 %v391, %v389
    %v636 = vpack.c.b16 %v394, %v392
    %v637 = vpack.c.b16 %v395, %v393
    %v638 = vpack.c.b16 %v398, %v396
    %v639 = vpack.c.b16 %v399, %v397
    %v640 = vpack.c.b16 %v402, %v400
    %v641 = vpack.c.b16 %v403, %v401
    %v642 = vpack.c.b16 %v406, %v404
    %v643 = vpack.c.b16 %v407, %v405
    %v644 = vpack.c.b16 %v410, %v408
    %v645 = vpack.c.b16 %v411, %v409
    %v646 = vpack.c.b16 %v414, %v412
    %v647 = vpack.c.b16 %v415, %v413
    %v648 = vpack.c.b16 %v418, %v416
    %v649 = vpack.c.b16 %v419, %v417
    %v650 = vpack.c.b16 %v422, %v420
    %v651 = vpack.c.b16 %v423, %v421
    %v652 = vpack.c.b16 %v426, %v424
    %v653 = vpack.c.b16 %v427, %v425
    %v654 = vpack.c.b16 %v430, %v428
    %v655 = vpack.c.b16 %v431, %v429
    %v656 = vpack.c.b16 %v434, %v432
    %v657 = vpack.c.b16 %v435, %v433
    %v658 = vpack.c.b16 %v438, %v436
    %v659 = vpack.c.b16 %v439, %v437
    %v660 = vpack.c.b16 %v442, %v440
    %v661 = vpack.c.b16 %v443, %v441
    %v662 = vpack.c.b16 %v446, %v444
    %v663 = vpack.c.b16 %v447, %v445
    %v664 = vpack.c.b16 %v450, %v448
    %v665 = vpack.c.b16 %v451, %v449
    %v666 = vpack.c.b16 %v454, %v452
    %v667 = vpack.c.b16 %v455, %v453
    %v668 = vpack.c.b16 %v458, %v456
    %v669 = vpack.c.b16 %v459, %v457
    %v670 = vpack.c.b16 %v462, %v460
    %v671 = vpack.c.b16 %v463, %v461
    %v672 = vpack.c.b16 %v466, %v464
    %v673 = vpack.c.b16 %v467, %v465
    %v674 = vpack.c.b16 %v470, %v468
    %v675 = vpack.c.b16 %v471, %v469
    %v676 = vpack.c.b16 %v474, %v472
    %v677 = vpack.c.b16 %v475, %v473
    %v678 = vpack.c.b16 %v478, %v476
    %v679 = vpack.c.b16 %v479, %v477
    %v680 = vpack.c.b16 %v482, %v480
    %v681 = vpack.c.b16 %v483, %v481
    %v682 = vpack.c.b16 %v486, %v484
    %v683 = vpack.c.b16 %v487, %v485
    %v684 = vpack.c.b16 %v490, %v488
    %v685 = vpack.c.b16 %v491, %v489
    %v686 = vpack.c.b16 %v494, %v492
    %v687 = vpack.c.b16 %v495, %v493
    %v688 = vpack.c.b16 %v498, %v496
    %v689 = vpack.c.b16 %v499, %v497
    %v690 = vpack.c.b16 %v502, %v500
    %v691 = vpack.c.b16 %v503, %v501
    %v692 = vpack.c.b16 %v506, %v504
    %v693 = vpack.c.b16 %v507, %v505
    %v694 = vpack.c.b16 %v510, %v508
    %v695 = vpack.c.b16 %v511, %v509
    %v696 = vpack.c.b16 %v514, %v512
    %v697 = vpack.c.b16 %v515, %v513
    %v698 = vpack.c.b16 %v518, %v516
    %v699 = vpack.c.b16 %v519, %v517
    %v700 = vpack.c.b16 %v522, %v520
    %v701 = vpack.c.b16 %v523, %v521
    %v702 = vpack.c.b16 %v526, %v524
    %v703 = vpack.c.b16 %v527, %v525
    %v704 = vpack.c.b16 %v530, %v528
    %v705 = vpack.c.b16 %v531, %v529
    %v706 = vpack.c.b16 %v534, %v532
    %v707 = vpack.c.b16 %v535, %v533
    %v708 = vpack.c.b16 %v538, %v536
    %v709 = vpack.c.b16 %v539, %v537
    %v710 = vpack.c.b16 %v542, %v540
    %v711 = vpack.c.b16 %v543, %v541
    %v712 = vpack.c.b16 %v546, %v544
    %v713 = vpack.c.b16 %v547, %v545
    %v714 = vpack.c.b16 %v550, %v548
    %v715 = vpack.c.b16 %v551, %v549
    %v716 = vpack.c.b16 %v554, %v552
    %v717 = vpack.c.b16 %v555, %v553
    %v718 = vpack.c.b16 %v558, %v556
    %v719 = vpack.c.b16 %v559, %v557
    %v720 = vpack.c.b16 %v562, %v560
    %v721 = vpack.c.b16 %v563, %v561
    %v722 = vpack.c.b16 %v566, %v564
    %v723 = vpack.c.b16 %v567, %v565
    %v724 = vpack.c.b16 %v570, %v568
    %v725 = vpack.c.b16 %v571, %v569
    %v726 = vpack.c.b16 %v574, %v572
    %v727 = vpack.c.b16 %v575, %v573
    %v728 = vpack.c.b16 %v578, %v576
    %v729 = vpack.c.b16 %v579, %v577
    %v730 = vpack.c.b16 %v582, %v580
    %v731 = vpack.c.b16 %v583, %v581
    %v732 = vpack.c.b16 %v586, %v584
    %v733 = vpack.c.b16 %v587, %v585
    %v734 = vpack.c.b16 %v590, %v588
    %v735 = vpack.c.b16 %v591, %v589
    %v736 = vpack.c.b16 %v594, %v592
    %v737 = vpack.c.b16 %v595, %v593
    %v738 = vpack.c.b16 %v598, %v596
    %v739 = vpack.c.b16 %v599, %v597
    %v740 = vpack.c.b16 %v602, %v600
    %v741 = vpack.c.b16 %v603, %v601
    %v742 = vpack.c.b16 %v606, %v604
    %v743 = vpack.c.b16 %v607, %v605
    %v744 = vpack.c.b16 %v610, %v608
    %v745 = vpack.c.b16 %v611, %v609
    %v746 = vpack.c.b16 %v614, %v612
    %v747 = vpack.c.b16 %v615, %v613
    %v748 = vpack.c.b16 %v618, %v616
    %v749 = vpack.c.b16 %v619, %v617
    %v750 = vpack.c.b16 %v622, %v620
    %v751 = vpack.c.b16 %v623, %v621
    %880 = vmatprep.subr.bf16.mxu0 %v625
    %881 = vmatpush1.bf16.msra.mxu0 %v624
    %882 = vmatprep.subr.bf16.mxu0 %v627
    %883 = vmatpush1.bf16.msra.mxu0 %v626
    %884 = vmatprep.subr.bf16.mxu0 %v629
    %885 = vmatpush1.bf16.msra.mxu0 %v628
    %886 = vmatprep.subr.bf16.mxu0 %v631
    %887 = vmatpush1.bf16.msra.mxu0 %v630
    %888 = vmatprep.subr.bf16.mxu0 %v633
    %889 = vmatpush1.bf16.msra.mxu0 %v632
    %890 = vmatprep.subr.bf16.mxu0 %v635
    %891 = vmatpush1.bf16.msra.mxu0 %v634
    %892 = vmatprep.subr.bf16.mxu0 %v637
    %893 = vmatpush1.bf16.msra.mxu0 %v636
    %894 = vmatprep.subr.bf16.mxu0 %v639
    %895 = vmatpush1.bf16.msra.mxu0 %v638
    %896 = vmatprep.subr.bf16.mxu0 %v641
    %897 = vmatpush1.bf16.msra.mxu0 %v640
    %898 = vmatprep.subr.bf16.mxu0 %v643
    %899 = vmatpush1.bf16.msra.mxu0 %v642
    %900 = vmatprep.subr.bf16.mxu0 %v645
    %901 = vmatpush1.bf16.msra.mxu0 %v644
    %902 = vmatprep.subr.bf16.mxu0 %v647
    %903 = vmatpush1.bf16.msra.mxu0 %v646
    %904 = vmatprep.subr.bf16.mxu0 %v649
    %905 = vmatpush1.bf16.msra.mxu0 %v648
    %906 = vmatprep.subr.bf16.mxu0 %v651
    %907 = vmatpush1.bf16.msra.mxu0 %v650
    %908 = vmatprep.subr.bf16.mxu0 %v653
    %909 = vmatpush1.bf16.msra.mxu0 %v652
    %910 = vmatprep.subr.bf16.mxu0 %v655
    %911 = vmatpush1.bf16.msra.mxu0 %v654
    %912 = vmatprep.mubr.bf16.mxu0 %v225
    %913 = vmatmul.mubr.bf16.gmra.mrb[0].mxu0 %v224
    %v914 = vpop.f32.mrb[0].mxu0
    %v915 = vadd.f32 %v205, %v914
    %v916 = vpop.f32.mrb[0].mxu0
    %v917 = vadd.f32 %v209, %v916
    %v918 = vpop.f32.mrb[0].mxu0
    %v919 = vpop.f32.mrb[0].mxu0
    %920 = vdwg.mxu0
    %921 = vmatprep.subr.bf16.mxu0 %v657
    %922 = vmatpush1.bf16.msra.mxu0 %v656
    %923 = vmatprep.subr.bf16.mxu0 %v659
    %924 = vmatpush1.bf16.msra.mxu0 %v658
    %925 = vmatprep.subr.bf16.mxu0 %v661
    %926 = vmatpush1.bf16.msra.mxu0 %v660
    %927 = vmatprep.subr.bf16.mxu0 %v663
    %928 = vmatpush1.bf16.msra.mxu0 %v662
    %929 = vmatprep.subr.bf16.mxu0 %v665
    %930 = vmatpush1.bf16.msra.mxu0 %v664
    %931 = vmatprep.subr.bf16.mxu0 %v667
    %932 = vmatpush1.bf16.msra.mxu0 %v666
    %933 = vmatprep.subr.bf16.mxu0 %v669
    %934 = vmatpush1.bf16.msra.mxu0 %v668
    %935 = vmatprep.subr.bf16.mxu0 %v671
    %936 = vmatpush1.bf16.msra.mxu0 %v670
    %937 = vmatprep.subr.bf16.mxu0 %v673
    %938 = vmatpush1.bf16.msra.mxu0 %v672
    %939 = vmatprep.subr.bf16.mxu0 %v675
    %940 = vmatpush1.bf16.msra.mxu0 %v674
    %941 = vmatprep.subr.bf16.mxu0 %v677
    %942 = vmatpush1.bf16.msra.mxu0 %v676
    %943 = vmatprep.subr.bf16.mxu0 %v679
    %944 = vmatpush1.bf16.msra.mxu0 %v678
    %945 = vmatprep.subr.bf16.mxu0 %v681
    %946 = vmatpush1.bf16.msra.mxu0 %v680
    %947 = vmatprep.subr.bf16.mxu0 %v683
    %948 = vmatpush1.bf16.msra.mxu0 %v682
    %949 = vmatprep.subr.bf16.mxu0 %v685
    %950 = vmatpush1.bf16.msra.mxu0 %v684
    %951 = vmatprep.subr.bf16.mxu0 %v687
    %952 = vmatpush1.bf16.msra.mxu0 %v686
    %953 = vmatprep.mubr.bf16.mxu0 %v227
    %954 = vmatmul.mubr.bf16.gmra.mrb[0].mxu0 %v226
    %v955 = vpop.f32.mrb[0].mxu0
    %v956 = vadd.f32 %v915, %v955
    %v957 = vpop.f32.mrb[0].mxu0
    %v958 = vadd.f32 %v917, %v957
    %v959 = vpop.f32.mrb[0].mxu0
    %v960 = vpop.f32.mrb[0].mxu0
    %961 = vdwg.mxu0
    %962 = vmatprep.subr.bf16.mxu0 %v689
    %963 = vmatpush1.bf16.msra.mxu0 %v688
    %964 = vmatprep.subr.bf16.mxu0 %v691
    %965 = vmatpush1.bf16.msra.mxu0 %v690
    %966 = vmatprep.subr.bf16.mxu0 %v693
    %967 = vmatpush1.bf16.msra.mxu0 %v692
    %968 = vmatprep.subr.bf16.mxu0 %v695
    %969 = vmatpush1.bf16.msra.mxu0 %v694
    %970 = vmatprep.subr.bf16.mxu0 %v697
    %971 = vmatpush1.bf16.msra.mxu0 %v696
    %972 = vmatprep.subr.bf16.mxu0 %v699
    %973 = vmatpush1.bf16.msra.mxu0 %v698
    %974 = vmatprep.subr.bf16.mxu0 %v701
    %975 = vmatpush1.bf16.msra.mxu0 %v700
    %976 = vmatprep.subr.bf16.mxu0 %v703
    %977 = vmatpush1.bf16.msra.mxu0 %v702
    %978 = vmatprep.subr.bf16.mxu0 %v705
    %979 = vmatpush1.bf16.msra.mxu0 %v704
    %980 = vmatprep.subr.bf16.mxu0 %v707
    %981 = vmatpush1.bf16.msra.mxu0 %v706
    %982 = vmatprep.subr.bf16.mxu0 %v709
    %983 = vmatpush1.bf16.msra.mxu0 %v708
    %984 = vmatprep.subr.bf16.mxu0 %v711
    %985 = vmatpush1.bf16.msra.mxu0 %v710
    %986 = vmatprep.subr.bf16.mxu0 %v713
    %987 = vmatpush1.bf16.msra.mxu0 %v712
    %988 = vmatprep.subr.bf16.mxu0 %v715
    %989 = vmatpush1.bf16.msra.mxu0 %v714
    %990 = vmatprep.subr.bf16.mxu0 %v717
    %991 = vmatpush1.bf16.msra.mxu0 %v716
    %992 = vmatprep.subr.bf16.mxu0 %v719
    %993 = vmatpush1.bf16.msra.mxu0 %v718
    %994 = vmatprep.mubr.bf16.mxu0 %v229
    %995 = vmatmul.mubr.bf16.gmra.mrb[0].mxu0 %v228
    %v996 = vpop.f32.mrb[0].mxu0
    %v997 = vadd.f32 %v956, %v996
    %v998 = vpop.f32.mrb[0].mxu0
    %v999 = vadd.f32 %v958, %v998
    %v1000 = vpop.f32.mrb[0].mxu0
    %v1001 = vpop.f32.mrb[0].mxu0
    %1002 = vdwg.mxu0
    %1003 = vmatprep.subr.bf16.mxu0 %v721
    %1004 = vmatpush1.bf16.msra.mxu0 %v720
    %1005 = vmatprep.subr.bf16.mxu0 %v723
    %1006 = vmatpush1.bf16.msra.mxu0 %v722
    %1007 = vmatprep.subr.bf16.mxu0 %v725
    %1008 = vmatpush1.bf16.msra.mxu0 %v724
    %1009 = vmatprep.subr.bf16.mxu0 %v727
    %1010 = vmatpush1.bf16.msra.mxu0 %v726
    %1011 = vmatprep.subr.bf16.mxu0 %v729
    %1012 = vmatpush1.bf16.msra.mxu0 %v728
    %1013 = vmatprep.subr.bf16.mxu0 %v731
    %1014 = vmatpush1.bf16.msra.mxu0 %v730
    %1015 = vmatprep.subr.bf16.mxu0 %v733
    %1016 = vmatpush1.bf16.msra.mxu0 %v732
    %1017 = vmatprep.subr.bf16.mxu0 %v735
    %1018 = vmatpush1.bf16.msra.mxu0 %v734
    %1019 = vmatprep.subr.bf16.mxu0 %v737
    %1020 = vmatpush1.bf16.msra.mxu0 %v736
    %1021 = vmatprep.subr.bf16.mxu0 %v739
    %1022 = vmatpush1.bf16.msra.mxu0 %v738
    %1023 = vmatprep.subr.bf16.mxu0 %v741
    %1024 = vmatpush1.bf16.msra.mxu0 %v740
    %1025 = vmatprep.subr.bf16.mxu0 %v743
    %1026 = vmatpush1.bf16.msra.mxu0 %v742
    %1027 = vmatprep.subr.bf16.mxu0 %v745
    %1028 = vmatpush1.bf16.msra.mxu0 %v744
    %1029 = vmatprep.subr.bf16.mxu0 %v747
    %1030 = vmatpush1.bf16.msra.mxu0 %v746
    %1031 = vmatprep.subr.bf16.mxu0 %v749
    %1032 = vmatpush1.bf16.msra.mxu0 %v748
    %1033 = vmatprep.subr.bf16.mxu0 %v751
    %1034 = vmatpush1.bf16.msra.mxu0 %v750
    %1035 = vmatprep.mubr.bf16.mxu0 %v231
    %1036 = vmatmul.mubr.bf16.gmra.mrb[0].mxu0 %v230
    %v1037 = vpop.f32.mrb[0].mxu0
    %v1038 = vadd.f32 %v997, %v1037
    %v1039 = vpop.f32.mrb[0].mxu0
    %v1040 = vadd.f32 %v999, %v1039
    %v1041 = vpop.f32.mrb[0].mxu0
    %v1042 = vpop.f32.mrb[0].mxu0
    %1043 = vdwg.mxu0
    %v1044 = vmax.f32 %v1038, 0.0
    %v1045 = vmax.f32 %v1040, 0.0
    %v1046 = vpack.c.bf16 %v1044, %v1044
    %v1047 = vpack.c.bf16 %v1045, %v1045
    %v1048 = vld [vmem:[%s4] sm:$0xf]
    %v1049 = vld [vmem:[%s4 + $0x4] sm:$0xf]
    %v1050 = vld [vmem:[%s4 + $0x8] sm:$0xf]
    %v1051 = vld [vmem:[%s4 + $0xc] sm:$0xf]
    %v1052 = vld [vmem:[%s4 + $0x10] sm:$0xf]
    %v1053 = vld [vmem:[%s4 + $0x14] sm:$0xf]
    %v1054 = vld [vmem:[%s4 + $0x18] sm:$0xf]
    %v1055 = vld [vmem:[%s4 + $0x1c] sm:$0xf]
    %v1056 = vld [vmem:[%s4 + $0x20] sm:$0xf]
    %v1057 = vld [vmem:[%s4 + $0x24] sm:$0xf]
    %v1058 = vld [vmem:[%s4 + $0x28] sm:$0xf]
    %v1059 = vld [vmem:[%s4 + $0x2c] sm:$0xf]
    %v1060 = vld [vmem:[%s4 + $0x30] sm:$0xf]
    %v1061 = vld [vmem:[%s4 + $0x34] sm:$0xf]
    %v1062 = vld [vmem:[%s4 + $0x38] sm:$0xf]
    %v1063 = vld [vmem:[%s4 + $0x3c] sm:$0xf]
    %v1064 = vld [vmem:[%s4 + $0x40] sm:$0xf]
    %v1065 = vld [vmem:[%s4 + $0x44] sm:$0xf]
    %v1066 = vld [vmem:[%s4 + $0x48] sm:$0xf]
    %v1067 = vld [vmem:[%s4 + $0x4c] sm:$0xf]
    %v1068 = vld [vmem:[%s4 + $0x50] sm:$0xf]
    %v1069 = vld [vmem:[%s4 + $0x54] sm:$0xf]
    %v1070 = vld [vmem:[%s4 + $0x58] sm:$0xf]
    %v1071 = vld [vmem:[%s4 + $0x5c] sm:$0xf]
    %v1072 = vld [vmem:[%s4 + $0x60] sm:$0xf]
    %v1073 = vld [vmem:[%s4 + $0x64] sm:$0xf]
    %v1074 = vld [vmem:[%s4 + $0x68] sm:$0xf]
    %v1075 = vld [vmem:[%s4 + $0x6c] sm:$0xf]
    %v1076 = vld [vmem:[%s4 + $0x70] sm:$0xf]
    %v1077 = vld [vmem:[%s4 + $0x74] sm:$0xf]
    %v1078 = vld [vmem:[%s4 + $0x78] sm:$0xf]
    %v1079 = vld [vmem:[%s4 + $0x7c] sm:$0xf]
    %v1080 = vld [vmem:[%s5] sm:$0x1]
    %v1082 = vlaneseq
    %v1083 = vshrl.u32 %v1082, 7
    %v1084 = vsub.s32 0, %v1083
    %v1085 = vrot.slane %v1080, %v1084
    %v1119 = vunpack.c.l.b16 %v1048
    %v1120 = vunpack.c.l.b16 %v1049
    %v1121 = vunpack.c.l.b16 %v1050
    %v1122 = vunpack.c.l.b16 %v1051
    %v1123 = vunpack.c.l.b16 %v1052
    %v1124 = vunpack.c.l.b16 %v1053
    %v1125 = vunpack.c.l.b16 %v1054
    %v1126 = vunpack.c.l.b16 %v1055
    %v1127 = vunpack.c.l.b16 %v1056
    %v1128 = vunpack.c.l.b16 %v1057
    %v1129 = vunpack.c.l.b16 %v1058
    %v1130 = vunpack.c.l.b16 %v1059
    %v1131 = vunpack.c.l.b16 %v1060
    %v1132 = vunpack.c.l.b16 %v1061
    %v1133 = vunpack.c.l.b16 %v1062
    %v1134 = vunpack.c.l.b16 %v1063
    %v1135 = vunpack.c.l.b16 %v1064
    %v1136 = vunpack.c.l.b16 %v1065
    %v1137 = vunpack.c.l.b16 %v1066
    %v1138 = vunpack.c.l.b16 %v1067
    %v1139 = vunpack.c.l.b16 %v1068
    %v1140 = vunpack.c.l.b16 %v1069
    %v1141 = vunpack.c.l.b16 %v1070
    %v1142 = vunpack.c.l.b16 %v1071
    %v1143 = vunpack.c.l.b16 %v1072
    %v1144 = vunpack.c.l.b16 %v1073
    %v1145 = vunpack.c.l.b16 %v1074
    %v1146 = vunpack.c.l.b16 %v1075
    %v1147 = vunpack.c.l.b16 %v1076
    %v1148 = vunpack.c.l.b16 %v1077
    %v1149 = vunpack.c.l.b16 %v1078
    %v1150 = vunpack.c.l.b16 %v1079
    %v1151 = vpack.c.b16 %v1120, %v1119
    %v1152 = vpack.c.b16 %v1122, %v1121
    %v1153 = vpack.c.b16 %v1124, %v1123
    %v1154 = vpack.c.b16 %v1126, %v1125
    %v1155 = vpack.c.b16 %v1128, %v1127
    %v1156 = vpack.c.b16 %v1130, %v1129
    %v1157 = vpack.c.b16 %v1132, %v1131
    %v1158 = vpack.c.b16 %v1134, %v1133
    %v1159 = vpack.c.b16 %v1136, %v1135
    %v1160 = vpack.c.b16 %v1138, %v1137
    %v1161 = vpack.c.b16 %v1140, %v1139
    %v1162 = vpack.c.b16 %v1142, %v1141
    %v1163 = vpack.c.b16 %v1144, %v1143
    %v1164 = vpack.c.b16 %v1146, %v1145
    %v1165 = vpack.c.b16 %v1148, %v1147
    %v1166 = vpack.c.b16 %v1150, %v1149
    %1183 = vmatprep.subr.bf16.mxu0 0
    %1184 = vmatpush1.bf16.msra.mxu0 %v1151
    %1185 = vmatprep.subr.bf16.mxu0 0
    %1186 = vmatpush1.bf16.msra.mxu0 %v1152
    %1187 = vmatprep.subr.bf16.mxu0 0
    %1188 = vmatpush1.bf16.msra.mxu0 %v1153
    %1189 = vmatprep.subr.bf16.mxu0 0
    %1190 = vmatpush1.bf16.msra.mxu0 %v1154
    %1191 = vmatprep.subr.bf16.mxu0 0
    %1192 = vmatpush1.bf16.msra.mxu0 %v1155
    %1193 = vmatprep.subr.bf16.mxu0 0
    %1194 = vmatpush1.bf16.msra.mxu0 %v1156
    %1195 = vmatprep.subr.bf16.mxu0 0
    %1196 = vmatpush1.bf16.msra.mxu0 %v1157
    %1197 = vmatprep.subr.bf16.mxu0 0
    %1198 = vmatpush1.bf16.msra.mxu0 %v1158
    %1199 = vmatprep.subr.bf16.mxu0 0
    %1200 = vmatpush1.bf16.msra.mxu0 %v1159
    %1201 = vmatprep.subr.bf16.mxu0 0
    %1202 = vmatpush1.bf16.msra.mxu0 %v1160
    %1203 = vmatprep.subr.bf16.mxu0 0
    %1204 = vmatpush1.bf16.msra.mxu0 %v1161
    %1205 = vmatprep.subr.bf16.mxu0 0
    %1206 = vmatpush1.bf16.msra.mxu0 %v1162
    %1207 = vmatprep.subr.bf16.mxu0 0
    %1208 = vmatpush1.bf16.msra.mxu0 %v1163
    %1209 = vmatprep.subr.bf16.mxu0 0
    %1210 = vmatpush1.bf16.msra.mxu0 %v1164
    %1211 = vmatprep.subr.bf16.mxu0 0
    %1212 = vmatpush1.bf16.msra.mxu0 %v1165
    %1213 = vmatprep.subr.bf16.mxu0 0
    %1214 = vmatpush1.bf16.msra.mxu0 %v1166
    %1215 = vmatprep.mubr.bf16.mxu0 %v1047
    %1216 = vmatmul.mubr.bf16.gmra.mrb[0].mxu0 %v1046
    %v1217 = vpop.f32.mrb[0].mxu0
    %v1218 = vadd.f32 %v1085, %v1217
    %v1219 = vpop.f32.mrb[0].mxu0
    %v1220 = vpop.f32.mrb[0].mxu0
    %v1221 = vpop.f32.mrb[0].mxu0
    %1222 = vdwg.mxu0
    %v1223 = vmul.f32 %v1218, 0.5
    %v1224 = vmul.f32 %v1223, 1.442695
    %v1225 = vpow.pop %v1224
    %v1226 = vld [vmem:[%s1] sm:$0xff]
    %1228 = vrot.lane.b32.xlu0 %v1225, 96
    %v1229 = vpop.permute.xlu0 %1228
    %v1231 = vmul.f32 %v1226, %v1229
    %v1232 = vadd.f32 %v1218, %v1231
    %v1233 = vpack.c.bf16 %v1232, %v1232
    %v1234 = vld [vmem:[%s6] sm:$0xff]
    %v1235 = vld [vmem:[%s6 + $0x8] sm:$0xff]
    %v1236 = vld [vmem:[%s6 + $0x10] sm:$0xff]
    %v1237 = vld [vmem:[%s6 + $0x18] sm:$0xff]
    %v1238 = vld [vmem:[%s7] sm:$0x3]
    %v1240 = vlaneseq
    %v1241 = vshrl.u32 %v1240, 7
    %v1242 = vsub.s32 0, %v1241
    %v1243 = vrot.slane %v1238, %v1242
    %v1244 = vlaneseq
    %v1245 = vshrl.u32 %v1244, 7
    %v1246 = vsub.s32 1, %v1245
    %v1247 = vrot.slane %v1238, %v1246
    %v1254 = vunpack.c.l.b16 %v1234
    %v1255 = vunpack.c.h.b16 %v1234
    %v1256 = vunpack.c.l.b16 %v1235
    %v1257 = vunpack.c.h.b16 %v1235
    %v1258 = vunpack.c.l.b16 %v1236
    %v1259 = vunpack.c.h.b16 %v1236
    %v1260 = vunpack.c.l.b16 %v1237
    %v1261 = vunpack.c.h.b16 %v1237
    %v1262 = vpack.c.b16 %v1256, %v1254
    %v1263 = vpack.c.b16 %v1257, %v1255
    %v1264 = vpack.c.b16 %v1260, %v1258
    %v1265 = vpack.c.b16 %v1261, %v1259
    %vm1270 = vcmask 261120
    %v1272 = vsel %vm1270, %v1233, 0
    %1274 = vmatprep.subr.bf16.mxu0 %v1263
    %1275 = vmatpush1.bf16.msra.mxu0 %v1262
    %1276 = vmatprep.subr.bf16.mxu0 %v1265
    %1277 = vmatpush1.bf16.msra.mxu0 %v1264
    %1278 = vmatprep.subr.bf16.mxu0 0
    %1279 = vmatpush1.bf16.msra.mxu0 0
    %1280 = vmatprep.subr.bf16.mxu0 0
    %1281 = vmatpush1.bf16.msra.mxu0 0
    %1282 = vmatprep.subr.bf16.mxu0 0
    %1283 = vmatpush1.bf16.msra.mxu0 0
    %1284 = vmatprep.subr.bf16.mxu0 0
    %1285 = vmatpush1.bf16.msra.mxu0 0
    %1286 = vmatprep.subr.bf16.mxu0 0
    %1287 = vmatpush1.bf16.msra.mxu0 0
    %1288 = vmatprep.subr.bf16.mxu0 0
    %1289 = vmatpush1.bf16.msra.mxu0 0
    %1290 = vmatprep.subr.bf16.mxu0 0
    %1291 = vmatpush1.bf16.msra.mxu0 0
    %1292 = vmatprep.subr.bf16.mxu0 0
    %1293 = vmatpush1.bf16.msra.mxu0 0
    %1294 = vmatprep.subr.bf16.mxu0 0
    %1295 = vmatpush1.bf16.msra.mxu0 0
    %1296 = vmatprep.subr.bf16.mxu0 0
    %1297 = vmatpush1.bf16.msra.mxu0 0
    %1298 = vmatprep.subr.bf16.mxu0 0
    %1299 = vmatpush1.bf16.msra.mxu0 0
    %1300 = vmatprep.subr.bf16.mxu0 0
    %1301 = vmatpush1.bf16.msra.mxu0 0
    %1302 = vmatprep.subr.bf16.mxu0 0
    %1303 = vmatpush1.bf16.msra.mxu0 0
    %1304 = vmatprep.subr.bf16.mxu0 0
    %1305 = vmatpush1.bf16.msra.mxu0 0
    %1306 = vmatprep.mubr.bf16.mxu0 0
    %1307 = vmatmul.mubr.bf16.gmra.mrb[0].mxu0 %v1272
    %v1308 = vpop.f32.mrb[0].mxu0
    %v1309 = vadd.f32 %v1243, %v1308
    %v1310 = vpop.f32.mrb[0].mxu0
    %v1311 = vadd.f32 %v1247, %v1310
    %v1312 = vpop.f32.mrb[0].mxu0
    %v1313 = vpop.f32.mrb[0].mxu0
    %1314 = vdwg.mxu0
    %v1315 = vmax.f32 %v1309, 0.0
    %v1316 = vmax.f32 %v1311, 0.0
    %v1317 = vpack.c.bf16 %v1315, %v1315
    %v1318 = vpack.c.bf16 %v1316, %v1316
    %v1319 = vld [vmem:[#allocation5] sm:$0xff]
    %v1320 = vld [vmem:[#allocation5 + $0x8] sm:$0xff]
    %v1321 = vld [vmem:[#allocation5 + $0x10] sm:$0xff]
    %v1322 = vld [vmem:[#allocation5 + $0x18] sm:$0xff]
    %v1323 = vld [vmem:[#allocation5 + $0x20] sm:$0xff]
    %v1324 = vld [vmem:[#allocation5 + $0x28] sm:$0xff]
    %v1325 = vld [vmem:[#allocation5 + $0x30] sm:$0xff]
    %v1326 = vld [vmem:[#allocation5 + $0x38] sm:$0xff]
    %v1327 = vld [vmem:[#allocation5 + $0x40] sm:$0xff]
    %v1328 = vld [vmem:[#allocation5 + $0x48] sm:$0xff]
    %v1329 = vld [vmem:[#allocation5 + $0x50] sm:$0xff]
    %v1330 = vld [vmem:[#allocation5 + $0x58] sm:$0xff]
    %v1331 = vld [vmem:[#allocation5 + $0x60] sm:$0xff]
    %v1332 = vld [vmem:[#allocation5 + $0x68] sm:$0xff]
    %v1333 = vld [vmem:[#allocation5 + $0x70] sm:$0xff]
    %v1334 = vld [vmem:[#allocation5 + $0x78] sm:$0xff]
    %v1335 = vld [vmem:[#allocation5 + $0x80] sm:$0xff]
    %v1336 = vld [vmem:[#allocation5 + $0x88] sm:$0xff]
    %v1337 = vld [vmem:[#allocation5 + $0x90] sm:$0xff]
    %v1338 = vld [vmem:[#allocation5 + $0x98] sm:$0xff]
    %v1339 = vld [vmem:[#allocation5 + $0xa0] sm:$0xff]
    %v1340 = vld [vmem:[#allocation5 + $0xa8] sm:$0xff]
    %v1341 = vld [vmem:[#allocation5 + $0xb0] sm:$0xff]
    %v1342 = vld [vmem:[#allocation5 + $0xb8] sm:$0xff]
    %v1343 = vld [vmem:[#allocation5 + $0xc0] sm:$0xff]
    %v1344 = vld [vmem:[#allocation5 + $0xc8] sm:$0xff]
    %v1345 = vld [vmem:[#allocation5 + $0xd0] sm:$0xff]
    %v1346 = vld [vmem:[#allocation5 + $0xd8] sm:$0xff]
    %v1347 = vld [vmem:[#allocation5 + $0xe0] sm:$0xff]
    %v1348 = vld [vmem:[#allocation5 + $0xe8] sm:$0xff]
    %v1349 = vld [vmem:[#allocation5 + $0xf0] sm:$0xff]
    %v1350 = vld [vmem:[#allocation5 + $0xf8] sm:$0xff]
    %v1351 = vld [vmem:[#allocation5 + $0x100] sm:$0xff]
    %v1352 = vld [vmem:[#allocation5 + $0x108] sm:$0xff]
    %v1353 = vld [vmem:[#allocation5 + $0x110] sm:$0xff]
    %v1354 = vld [vmem:[#allocation5 + $0x118] sm:$0xff]
    %v1355 = vld [vmem:[#allocation5 + $0x120] sm:$0xff]
    %v1356 = vld [vmem:[#allocation5 + $0x128] sm:$0xff]
    %v1357 = vld [vmem:[#allocation5 + $0x130] sm:$0xff]
    %v1358 = vld [vmem:[#allocation5 + $0x138] sm:$0xff]
    %v1359 = vld [vmem:[#allocation5 + $0x140] sm:$0xff]
    %v1360 = vld [vmem:[#allocation5 + $0x148] sm:$0xff]
    %v1361 = vld [vmem:[#allocation5 + $0x150] sm:$0xff]
    %v1362 = vld [vmem:[#allocation5 + $0x158] sm:$0xff]
    %v1363 = vld [vmem:[#allocation5 + $0x160] sm:$0xff]
    %v1364 = vld [vmem:[#allocation5 + $0x168] sm:$0xff]
    %v1365 = vld [vmem:[#allocation5 + $0x170] sm:$0xff]
    %v1366 = vld [vmem:[#allocation5 + $0x178] sm:$0xff]
    %v1367 = vld [vmem:[#allocation5 + $0x180] sm:$0xff]
    %v1368 = vld [vmem:[#allocation5 + $0x188] sm:$0xff]
    %v1369 = vld [vmem:[#allocation5 + $0x190] sm:$0xff]
    %v1370 = vld [vmem:[#allocation5 + $0x198] sm:$0xff]
    %v1371 = vld [vmem:[#allocation5 + $0x1a0] sm:$0xff]
    %v1372 = vld [vmem:[#allocation5 + $0x1a8] sm:$0xff]
    %v1373 = vld [vmem:[#allocation5 + $0x1b0] sm:$0xff]
    %v1374 = vld [vmem:[#allocation5 + $0x1b8] sm:$0xff]
    %v1375 = vld [vmem:[#allocation5 + $0x1c0] sm:$0xff]
    %v1376 = vld [vmem:[#allocation5 + $0x1c8] sm:$0xff]
    %v1377 = vld [vmem:[#allocation5 + $0x1d0] sm:$0xff]
    %v1378 = vld [vmem:[#allocation5 + $0x1d8] sm:$0xff]
    %v1379 = vld [vmem:[#allocation5 + $0x1e0] sm:$0xff]
    %v1380 = vld [vmem:[#allocation5 + $0x1e8] sm:$0xff]
    %v1381 = vld [vmem:[#allocation5 + $0x1f0] sm:$0xff]
    %v1382 = vld [vmem:[#allocation5 + $0x1f8] sm:$0xff]
    %v1383 = vld [vmem:[#allocation5 + $0x200] sm:$0xff]
    %v1384 = vld [vmem:[#allocation5 + $0x208] sm:$0xff]
    %v1385 = vld [vmem:[#allocation5 + $0x210] sm:$0xff]
    %v1386 = vld [vmem:[#allocation5 + $0x218] sm:$0xff]
    %v1387 = vld [vmem:[#allocation5 + $0x220] sm:$0xff]
    %v1388 = vld [vmem:[#allocation5 + $0x228] sm:$0xff]
    %v1389 = vld [vmem:[#allocation5 + $0x230] sm:$0xff]
    %v1390 = vld [vmem:[#allocation5 + $0x238] sm:$0xff]
    %v1391 = vld [vmem:[#allocation5 + $0x240] sm:$0xff]
    %v1392 = vld [vmem:[#allocation5 + $0x248] sm:$0xff]
    %v1393 = vld [vmem:[#allocation5 + $0x250] sm:$0xff]
    %v1394 = vld [vmem:[#allocation5 + $0x258] sm:$0xff]
    %v1395 = vld [vmem:[#allocation5 + $0x260] sm:$0xff]
    %v1396 = vld [vmem:[#allocation5 + $0x268] sm:$0xff]
    %v1397 = vld [vmem:[#allocation5 + $0x270] sm:$0xff]
    %v1398 = vld [vmem:[#allocation5 + $0x278] sm:$0xff]
    %v1399 = vld [vmem:[#allocation5 + $0x280] sm:$0xff]
    %v1400 = vld [vmem:[#allocation5 + $0x288] sm:$0xff]
    %v1401 = vld [vmem:[#allocation5 + $0x290] sm:$0xff]
    %v1402 = vld [vmem:[#allocation5 + $0x298] sm:$0xff]
    %v1403 = vld [vmem:[#allocation5 + $0x2a0] sm:$0xff]
    %v1404 = vld [vmem:[#allocation5 + $0x2a8] sm:$0xff]
    %v1405 = vld [vmem:[#allocation5 + $0x2b0] sm:$0xff]
    %v1406 = vld [vmem:[#allocation5 + $0x2b8] sm:$0xff]
    %v1407 = vld [vmem:[#allocation5 + $0x2c0] sm:$0xff]
    %v1408 = vld [vmem:[#allocation5 + $0x2c8] sm:$0xff]
    %v1409 = vld [vmem:[#allocation5 + $0x2d0] sm:$0xff]
    %v1410 = vld [vmem:[#allocation5 + $0x2d8] sm:$0xff]
    %v1411 = vld [vmem:[#allocation5 + $0x2e0] sm:$0xff]
    %v1412 = vld [vmem:[#allocation5 + $0x2e8] sm:$0xff]
    %v1413 = vld [vmem:[#allocation5 + $0x2f0] sm:$0xff]
    %v1414 = vld [vmem:[#allocation5 + $0x2f8] sm:$0xff]
    %v1415 = vld [vmem:[#allocation5 + $0x300] sm:$0xff]
    %v1416 = vld [vmem:[#allocation5 + $0x308] sm:$0xff]
    %v1417 = vld [vmem:[#allocation5 + $0x310] sm:$0xff]
    %v1418 = vld [vmem:[#allocation5 + $0x318] sm:$0xff]
    %v1419 = vld [vmem:[#allocation5 + $0x320] sm:$0xff]
    %v1420 = vld [vmem:[#allocation5 + $0x328] sm:$0xff]
    %v1421 = vld [vmem:[#allocation5 + $0x330] sm:$0xff]
    %v1422 = vld [vmem:[#allocation5 + $0x338] sm:$0xff]
    %v1423 = vld [vmem:[#allocation5 + $0x340] sm:$0xff]
    %v1424 = vld [vmem:[#allocation5 + $0x348] sm:$0xff]
    %v1425 = vld [vmem:[#allocation5 + $0x350] sm:$0xff]
    %v1426 = vld [vmem:[#allocation5 + $0x358] sm:$0xff]
    %v1427 = vld [vmem:[#allocation5 + $0x360] sm:$0xff]
    %v1428 = vld [vmem:[#allocation5 + $0x368] sm:$0xff]
    %v1429 = vld [vmem:[#allocation5 + $0x370] sm:$0xff]
    %v1430 = vld [vmem:[#allocation5 + $0x378] sm:$0xff]
    %v1431 = vld [vmem:[#allocation5 + $0x380] sm:$0xff]
    %v1432 = vld [vmem:[#allocation5 + $0x388] sm:$0xff]
    %v1433 = vld [vmem:[#allocation5 + $0x390] sm:$0xff]
    %v1434 = vld [vmem:[#allocation5 + $0x398] sm:$0xff]
    %v1435 = vld [vmem:[#allocation5 + $0x3a0] sm:$0xff]
    %v1436 = vld [vmem:[#allocation5 + $0x3a8] sm:$0xff]
    %v1437 = vld [vmem:[#allocation5 + $0x3b0] sm:$0xff]
    %v1438 = vld [vmem:[#allocation5 + $0x3b8] sm:$0xff]
    %v1439 = vld [vmem:[#allocation5 + $0x3c0] sm:$0xff]
    %v1440 = vld [vmem:[#allocation5 + $0x3c8] sm:$0xff]
    %v1441 = vld [vmem:[#allocation5 + $0x3d0] sm:$0xff]
    %v1442 = vld [vmem:[#allocation5 + $0x3d8] sm:$0xff]
    %v1443 = vld [vmem:[#allocation5 + $0x3e0] sm:$0xff]
    %v1444 = vld [vmem:[#allocation5 + $0x3e8] sm:$0xff]
    %v1445 = vld [vmem:[#allocation5 + $0x3f0] sm:$0xff]
    %v1446 = vld [vmem:[#allocation5 + $0x3f8] sm:$0xff]
    %v1447 = vld [vmem:[%s9] sm:$0xff]
    %v1449 = vlaneseq
    %v1450 = vshrl.u32 %v1449, 7
    %v1451 = vsub.s32 0, %v1450
    %v1452 = vrot.slane %v1447, %v1451
    %v1453 = vlaneseq
    %v1454 = vshrl.u32 %v1453, 7
    %v1455 = vsub.s32 1, %v1454
    %v1456 = vrot.slane %v1447, %v1455
    %v1457 = vlaneseq
    %v1458 = vshrl.u32 %v1457, 7
    %v1459 = vsub.s32 2, %v1458
    %v1460 = vrot.slane %v1447, %v1459
    %v1461 = vlaneseq
    %v1462 = vshrl.u32 %v1461, 7
    %v1463 = vsub.s32 3, %v1462
    %v1464 = vrot.slane %v1447, %v1463
    %v1465 = vlaneseq
    %v1466 = vshrl.u32 %v1465, 7
    %v1467 = vsub.s32 4, %v1466
    %v1468 = vrot.slane %v1447, %v1467
    %v1469 = vlaneseq
    %v1470 = vshrl.u32 %v1469, 7
    %v1471 = vsub.s32 5, %v1470
    %v1472 = vrot.slane %v1447, %v1471
    %v1473 = vlaneseq
    %v1474 = vshrl.u32 %v1473, 7
    %v1475 = vsub.s32 6, %v1474
    %v1476 = vrot.slane %v1447, %v1475
    %v1477 = vlaneseq
    %v1478 = vshrl.u32 %v1477, 7
    %v1479 = vsub.s32 7, %v1478
    %v1480 = vrot.slane %v1447, %v1479
    %v1617 = vunpack.c.l.b16 %v1319
    %v1618 = vunpack.c.h.b16 %v1319
    %v1619 = vunpack.c.l.b16 %v1320
    %v1620 = vunpack.c.h.b16 %v1320
    %v1621 = vunpack.c.l.b16 %v1321
    %v1622 = vunpack.c.h.b16 %v1321
    %v1623 = vunpack.c.l.b16 %v1322
    %v1624 = vunpack.c.h.b16 %v1322
    %v1625 = vunpack.c.l.b16 %v1323
    %v1626 = vunpack.c.h.b16 %v1323
    %v1627 = vunpack.c.l.b16 %v1324
    %v1628 = vunpack.c.h.b16 %v1324
    %v1629 = vunpack.c.l.b16 %v1325
    %v1630 = vunpack.c.h.b16 %v1325
    %v1631 = vunpack.c.l.b16 %v1326
    %v1632 = vunpack.c.h.b16 %v1326
    %v1633 = vunpack.c.l.b16 %v1327
    %v1634 = vunpack.c.h.b16 %v1327
    %v1635 = vunpack.c.l.b16 %v1328
    %v1636 = vunpack.c.h.b16 %v1328
    %v1637 = vunpack.c.l.b16 %v1329
    %v1638 = vunpack.c.h.b16 %v1329
    %v1639 = vunpack.c.l.b16 %v1330
    %v1640 = vunpack.c.h.b16 %v1330
    %v1641 = vunpack.c.l.b16 %v1331
    %v1642 = vunpack.c.h.b16 %v1331
    %v1643 = vunpack.c.l.b16 %v1332
    %v1644 = vunpack.c.h.b16 %v1332
    %v1645 = vunpack.c.l.b16 %v1333
    %v1646 = vunpack.c.h.b16 %v1333
    %v1647 = vunpack.c.l.b16 %v1334
    %v1648 = vunpack.c.h.b16 %v1334
    %v1649 = vunpack.c.l.b16 %v1335
    %v1650 = vunpack.c.h.b16 %v1335
    %v1651 = vunpack.c.l.b16 %v1336
    %v1652 = vunpack.c.h.b16 %v1336
    %v1653 = vunpack.c.l.b16 %v1337
    %v1654 = vunpack.c.h.b16 %v1337
    %v1655 = vunpack.c.l.b16 %v1338
    %v1656 = vunpack.c.h.b16 %v1338
    %v1657 = vunpack.c.l.b16 %v1339
    %v1658 = vunpack.c.h.b16 %v1339
    %v1659 = vunpack.c.l.b16 %v1340
    %v1660 = vunpack.c.h.b16 %v1340
    %v1661 = vunpack.c.l.b16 %v1341
    %v1662 = vunpack.c.h.b16 %v1341
    %v1663 = vunpack.c.l.b16 %v1342
    %v1664 = vunpack.c.h.b16 %v1342
    %v1665 = vunpack.c.l.b16 %v1343
    %v1666 = vunpack.c.h.b16 %v1343
    %v1667 = vunpack.c.l.b16 %v1344
    %v1668 = vunpack.c.h.b16 %v1344
    %v1669 = vunpack.c.l.b16 %v1345
    %v1670 = vunpack.c.h.b16 %v1345
    %v1671 = vunpack.c.l.b16 %v1346
    %v1672 = vunpack.c.h.b16 %v1346
    %v1673 = vunpack.c.l.b16 %v1347
    %v1674 = vunpack.c.h.b16 %v1347
    %v1675 = vunpack.c.l.b16 %v1348
    %v1676 = vunpack.c.h.b16 %v1348
    %v1677 = vunpack.c.l.b16 %v1349
    %v1678 = vunpack.c.h.b16 %v1349
    %v1679 = vunpack.c.l.b16 %v1350
    %v1680 = vunpack.c.h.b16 %v1350
    %v1681 = vunpack.c.l.b16 %v1351
    %v1682 = vunpack.c.h.b16 %v1351
    %v1683 = vunpack.c.l.b16 %v1352
    %v1684 = vunpack.c.h.b16 %v1352
    %v1685 = vunpack.c.l.b16 %v1353
    %v1686 = vunpack.c.h.b16 %v1353
    %v1687 = vunpack.c.l.b16 %v1354
    %v1688 = vunpack.c.h.b16 %v1354
    %v1689 = vunpack.c.l.b16 %v1355
    %v1690 = vunpack.c.h.b16 %v1355
    %v1691 = vunpack.c.l.b16 %v1356
    %v1692 = vunpack.c.h.b16 %v1356
    %v1693 = vunpack.c.l.b16 %v1357
    %v1694 = vunpack.c.h.b16 %v1357
    %v1695 = vunpack.c.l.b16 %v1358
    %v1696 = vunpack.c.h.b16 %v1358
    %v1697 = vunpack.c.l.b16 %v1359
    %v1698 = vunpack.c.h.b16 %v1359
    %v1699 = vunpack.c.l.b16 %v1360
    %v1700 = vunpack.c.h.b16 %v1360
    %v1701 = vunpack.c.l.b16 %v1361
    %v1702 = vunpack.c.h.b16 %v1361
    %v1703 = vunpack.c.l.b16 %v1362
    %v1704 = vunpack.c.h.b16 %v1362
    %v1705 = vunpack.c.l.b16 %v1363
    %v1706 = vunpack.c.h.b16 %v1363
    %v1707 = vunpack.c.l.b16 %v1364
    %v1708 = vunpack.c.h.b16 %v1364
    %v1709 = vunpack.c.l.b16 %v1365
    %v1710 = vunpack.c.h.b16 %v1365
    %v1711 = vunpack.c.l.b16 %v1366
    %v1712 = vunpack.c.h.b16 %v1366
    %v1713 = vunpack.c.l.b16 %v1367
    %v1714 = vunpack.c.h.b16 %v1367
    %v1715 = vunpack.c.l.b16 %v1368
    %v1716 = vunpack.c.h.b16 %v1368
    %v1717 = vunpack.c.l.b16 %v1369
    %v1718 = vunpack.c.h.b16 %v1369
    %v1719 = vunpack.c.l.b16 %v1370
    %v1720 = vunpack.c.h.b16 %v1370
    %v1721 = vunpack.c.l.b16 %v1371
    %v1722 = vunpack.c.h.b16 %v1371
    %v1723 = vunpack.c.l.b16 %v1372
    %v1724 = vunpack.c.h.b16 %v1372
    %v1725 = vunpack.c.l.b16 %v1373
    %v1726 = vunpack.c.h.b16 %v1373
    %v1727 = vunpack.c.l.b16 %v1374
    %v1728 = vunpack.c.h.b16 %v1374
    %v1729 = vunpack.c.l.b16 %v1375
    %v1730 = vunpack.c.h.b16 %v1375
    %v1731 = vunpack.c.l.b16 %v1376
    %v1732 = vunpack.c.h.b16 %v1376
    %v1733 = vunpack.c.l.b16 %v1377
    %v1734 = vunpack.c.h.b16 %v1377
    %v1735 = vunpack.c.l.b16 %v1378
    %v1736 = vunpack.c.h.b16 %v1378
    %v1737 = vunpack.c.l.b16 %v1379
    %v1738 = vunpack.c.h.b16 %v1379
    %v1739 = vunpack.c.l.b16 %v1380
    %v1740 = vunpack.c.h.b16 %v1380
    %v1741 = vunpack.c.l.b16 %v1381
    %v1742 = vunpack.c.h.b16 %v1381
    %v1743 = vunpack.c.l.b16 %v1382
    %v1744 = vunpack.c.h.b16 %v1382
    %v1745 = vunpack.c.l.b16 %v1383
    %v1746 = vunpack.c.h.b16 %v1383
    %v1747 = vunpack.c.l.b16 %v1384
    %v1748 = vunpack.c.h.b16 %v1384
    %v1749 = vunpack.c.l.b16 %v1385
    %v1750 = vunpack.c.h.b16 %v1385
    %v1751 = vunpack.c.l.b16 %v1386
    %v1752 = vunpack.c.h.b16 %v1386
    %v1753 = vunpack.c.l.b16 %v1387
    %v1754 = vunpack.c.h.b16 %v1387
    %v1755 = vunpack.c.l.b16 %v1388
    %v1756 = vunpack.c.h.b16 %v1388
    %v1757 = vunpack.c.l.b16 %v1389
    %v1758 = vunpack.c.h.b16 %v1389
    %v1759 = vunpack.c.l.b16 %v1390
    %v1760 = vunpack.c.h.b16 %v1390
    %v1761 = vunpack.c.l.b16 %v1391
    %v1762 = vunpack.c.h.b16 %v1391
    %v1763 = vunpack.c.l.b16 %v1392
    %v1764 = vunpack.c.h.b16 %v1392
    %v1765 = vunpack.c.l.b16 %v1393
    %v1766 = vunpack.c.h.b16 %v1393
    %v1767 = vunpack.c.l.b16 %v1394
    %v1768 = vunpack.c.h.b16 %v1394
    %v1769 = vunpack.c.l.b16 %v1395
    %v1770 = vunpack.c.h.b16 %v1395
    %v1771 = vunpack.c.l.b16 %v1396
    %v1772 = vunpack.c.h.b16 %v1396
    %v1773 = vunpack.c.l.b16 %v1397
    %v1774 = vunpack.c.h.b16 %v1397
    %v1775 = vunpack.c.l.b16 %v1398
    %v1776 = vunpack.c.h.b16 %v1398
    %v1777 = vunpack.c.l.b16 %v1399
    %v1778 = vunpack.c.h.b16 %v1399
    %v1779 = vunpack.c.l.b16 %v1400
    %v1780 = vunpack.c.h.b16 %v1400
    %v1781 = vunpack.c.l.b16 %v1401
    %v1782 = vunpack.c.h.b16 %v1401
    %v1783 = vunpack.c.l.b16 %v1402
    %v1784 = vunpack.c.h.b16 %v1402
    %v1785 = vunpack.c.l.b16 %v1403
    %v1786 = vunpack.c.h.b16 %v1403
    %v1787 = vunpack.c.l.b16 %v1404
    %v1788 = vunpack.c.h.b16 %v1404
    %v1789 = vunpack.c.l.b16 %v1405
    %v1790 = vunpack.c.h.b16 %v1405
    %v1791 = vunpack.c.l.b16 %v1406
    %v1792 = vunpack.c.h.b16 %v1406
    %v1793 = vunpack.c.l.b16 %v1407
    %v1794 = vunpack.c.h.b16 %v1407
    %v1795 = vunpack.c.l.b16 %v1408
    %v1796 = vunpack.c.h.b16 %v1408
    %v1797 = vunpack.c.l.b16 %v1409
    %v1798 = vunpack.c.h.b16 %v1409
    %v1799 = vunpack.c.l.b16 %v1410
    %v1800 = vunpack.c.h.b16 %v1410
    %v1801 = vunpack.c.l.b16 %v1411
    %v1802 = vunpack.c.h.b16 %v1411
    %v1803 = vunpack.c.l.b16 %v1412
    %v1804 = vunpack.c.h.b16 %v1412
    %v1805 = vunpack.c.l.b16 %v1413
    %v1806 = vunpack.c.h.b16 %v1413
    %v1807 = vunpack.c.l.b16 %v1414
    %v1808 = vunpack.c.h.b16 %v1414
    %v1809 = vunpack.c.l.b16 %v1415
    %v1810 = vunpack.c.h.b16 %v1415
    %v1811 = vunpack.c.l.b16 %v1416
    %v1812 = vunpack.c.h.b16 %v1416
    %v1813 = vunpack.c.l.b16 %v1417
    %v1814 = vunpack.c.h.b16 %v1417
    %v1815 = vunpack.c.l.b16 %v1418
    %v1816 = vunpack.c.h.b16 %v1418
    %v1817 = vunpack.c.l.b16 %v1419
    %v1818 = vunpack.c.h.b16 %v1419
    %v1819 = vunpack.c.l.b16 %v1420
    %v1820 = vunpack.c.h.b16 %v1420
    %v1821 = vunpack.c.l.b16 %v1421
    %v1822 = vunpack.c.h.b16 %v1421
    %v1823 = vunpack.c.l.b16 %v1422
    %v1824 = vunpack.c.h.b16 %v1422
    %v1825 = vunpack.c.l.b16 %v1423
    %v1826 = vunpack.c.h.b16 %v1423
    %v1827 = vunpack.c.l.b16 %v1424
    %v1828 = vunpack.c.h.b16 %v1424
    %v1829 = vunpack.c.l.b16 %v1425
    %v1830 = vunpack.c.h.b16 %v1425
    %v1831 = vunpack.c.l.b16 %v1426
    %v1832 = vunpack.c.h.b16 %v1426
    %v1833 = vunpack.c.l.b16 %v1427
    %v1834 = vunpack.c.h.b16 %v1427
    %v1835 = vunpack.c.l.b16 %v1428
    %v1836 = vunpack.c.h.b16 %v1428
    %v1837 = vunpack.c.l.b16 %v1429
    %v1838 = vunpack.c.h.b16 %v1429
    %v1839 = vunpack.c.l.b16 %v1430
    %v1840 = vunpack.c.h.b16 %v1430
    %v1841 = vunpack.c.l.b16 %v1431
    %v1842 = vunpack.c.h.b16 %v1431
    %v1843 = vunpack.c.l.b16 %v1432
    %v1844 = vunpack.c.h.b16 %v1432
    %v1845 = vunpack.c.l.b16 %v1433
    %v1846 = vunpack.c.h.b16 %v1433
    %v1847 = vunpack.c.l.b16 %v1434
    %v1848 = vunpack.c.h.b16 %v1434
    %v1849 = vunpack.c.l.b16 %v1435
    %v1850 = vunpack.c.h.b16 %v1435
    %v1851 = vunpack.c.l.b16 %v1436
    %v1852 = vunpack.c.h.b16 %v1436
    %v1853 = vunpack.c.l.b16 %v1437
    %v1854 = vunpack.c.h.b16 %v1437
    %v1855 = vunpack.c.l.b16 %v1438
    %v1856 = vunpack.c.h.b16 %v1438
    %v1857 = vunpack.c.l.b16 %v1439
    %v1858 = vunpack.c.h.b16 %v1439
    %v1859 = vunpack.c.l.b16 %v1440
    %v1860 = vunpack.c.h.b16 %v1440
    %v1861 = vunpack.c.l.b16 %v1441
    %v1862 = vunpack.c.h.b16 %v1441
    %v1863 = vunpack.c.l.b16 %v1442
    %v1864 = vunpack.c.h.b16 %v1442
    %v1865 = vunpack.c.l.b16 %v1443
    %v1866 = vunpack.c.h.b16 %v1443
    %v1867 = vunpack.c.l.b16 %v1444
    %v1868 = vunpack.c.h.b16 %v1444
    %v1869 = vunpack.c.l.b16 %v1445
    %v1870 = vunpack.c.h.b16 %v1445
    %v1871 = vunpack.c.l.b16 %v1446
    %v1872 = vunpack.c.h.b16 %v1446
    %v1873 = vpack.c.b16 %v1625, %v1617
    %v1874 = vpack.c.b16 %v1626, %v1618
    %v1875 = vpack.c.b16 %v1627, %v1619
    %v1876 = vpack.c.b16 %v1628, %v1620
    %v1877 = vpack.c.b16 %v1629, %v1621
    %v1878 = vpack.c.b16 %v1630, %v1622
    %v1879 = vpack.c.b16 %v1631, %v1623
    %v1880 = vpack.c.b16 %v1632, %v1624
    %v1881 = vpack.c.b16 %v1641, %v1633
    %v1882 = vpack.c.b16 %v1642, %v1634
    %v1883 = vpack.c.b16 %v1643, %v1635
    %v1884 = vpack.c.b16 %v1644, %v1636
    %v1885 = vpack.c.b16 %v1645, %v1637
    %v1886 = vpack.c.b16 %v1646, %v1638
    %v1887 = vpack.c.b16 %v1647, %v1639
    %v1888 = vpack.c.b16 %v1648, %v1640
    %v1889 = vpack.c.b16 %v1657, %v1649
    %v1890 = vpack.c.b16 %v1658, %v1650
    %v1891 = vpack.c.b16 %v1659, %v1651
    %v1892 = vpack.c.b16 %v1660, %v1652
    %v1893 = vpack.c.b16 %v1661, %v1653
    %v1894 = vpack.c.b16 %v1662, %v1654
    %v1895 = vpack.c.b16 %v1663, %v1655
    %v1896 = vpack.c.b16 %v1664, %v1656
    %v1897 = vpack.c.b16 %v1673, %v1665
    %v1898 = vpack.c.b16 %v1674, %v1666
    %v1899 = vpack.c.b16 %v1675, %v1667
    %v1900 = vpack.c.b16 %v1676, %v1668
    %v1901 = vpack.c.b16 %v1677, %v1669
    %v1902 = vpack.c.b16 %v1678, %v1670
    %v1903 = vpack.c.b16 %v1679, %v1671
    %v1904 = vpack.c.b16 %v1680, %v1672
    %v1905 = vpack.c.b16 %v1689, %v1681
    %v1906 = vpack.c.b16 %v1690, %v1682
    %v1907 = vpack.c.b16 %v1691, %v1683
    %v1908 = vpack.c.b16 %v1692, %v1684
    %v1909 = vpack.c.b16 %v1693, %v1685
    %v1910 = vpack.c.b16 %v1694, %v1686
    %v1911 = vpack.c.b16 %v1695, %v1687
    %v1912 = vpack.c.b16 %v1696, %v1688
    %v1913 = vpack.c.b16 %v1705, %v1697
    %v1914 = vpack.c.b16 %v1706, %v1698
    %v1915 = vpack.c.b16 %v1707, %v1699
    %v1916 = vpack.c.b16 %v1708, %v1700
    %v1917 = vpack.c.b16 %v1709, %v1701
    %v1918 = vpack.c.b16 %v1710, %v1702
    %v1919 = vpack.c.b16 %v1711, %v1703
    %v1920 = vpack.c.b16 %v1712, %v1704
    %v1921 = vpack.c.b16 %v1721, %v1713
    %v1922 = vpack.c.b16 %v1722, %v1714
    %v1923 = vpack.c.b16 %v1723, %v1715
    %v1924 = vpack.c.b16 %v1724, %v1716
    %v1925 = vpack.c.b16 %v1725, %v1717
    %v1926 = vpack.c.b16 %v1726, %v1718
    %v1927 = vpack.c.b16 %v1727, %v1719
    %v1928 = vpack.c.b16 %v1728, %v1720
    %v1929 = vpack.c.b16 %v1737, %v1729
    %v1930 = vpack.c.b16 %v1738, %v1730
    %v1931 = vpack.c.b16 %v1739, %v1731
    %v1932 = vpack.c.b16 %v1740, %v1732
    %v1933 = vpack.c.b16 %v1741, %v1733
    %v1934 = vpack.c.b16 %v1742, %v1734
    %v1935 = vpack.c.b16 %v1743, %v1735
    %v1936 = vpack.c.b16 %v1744, %v1736
    %v1937 = vpack.c.b16 %v1753, %v1745
    %v1938 = vpack.c.b16 %v1754, %v1746
    %v1939 = vpack.c.b16 %v1755, %v1747
    %v1940 = vpack.c.b16 %v1756, %v1748
    %v1941 = vpack.c.b16 %v1757, %v1749
    %v1942 = vpack.c.b16 %v1758, %v1750
    %v1943 = vpack.c.b16 %v1759, %v1751
    %v1944 = vpack.c.b16 %v1760, %v1752
    %v1945 = vpack.c.b16 %v1769, %v1761
    %v1946 = vpack.c.b16 %v1770, %v1762
    %v1947 = vpack.c.b16 %v1771, %v1763
    %v1948 = vpack.c.b16 %v1772, %v1764
    %v1949 = vpack.c.b16 %v1773, %v1765
    %v1950 = vpack.c.b16 %v1774, %v1766
    %v1951 = vpack.c.b16 %v1775, %v1767
    %v1952 = vpack.c.b16 %v1776, %v1768
    %v1953 = vpack.c.b16 %v1785, %v1777
    %v1954 = vpack.c.b16 %v1786, %v1778
    %v1955 = vpack.c.b16 %v1787, %v1779
    %v1956 = vpack.c.b16 %v1788, %v1780
    %v1957 = vpack.c.b16 %v1789, %v1781
    %v1958 = vpack.c.b16 %v1790, %v1782
    %v1959 = vpack.c.b16 %v1791, %v1783
    %v1960 = vpack.c.b16 %v1792, %v1784
    %v1961 = vpack.c.b16 %v1801, %v1793
    %v1962 = vpack.c.b16 %v1802, %v1794
    %v1963 = vpack.c.b16 %v1803, %v1795
    %v1964 = vpack.c.b16 %v1804, %v1796
    %v1965 = vpack.c.b16 %v1805, %v1797
    %v1966 = vpack.c.b16 %v1806, %v1798
    %v1967 = vpack.c.b16 %v1807, %v1799
    %v1968 = vpack.c.b16 %v1808, %v1800
    %v1969 = vpack.c.b16 %v1817, %v1809
    %v1970 = vpack.c.b16 %v1818, %v1810
    %v1971 = vpack.c.b16 %v1819, %v1811
    %v1972 = vpack.c.b16 %v1820, %v1812
    %v1973 = vpack.c.b16 %v1821, %v1813
    %v1974 = vpack.c.b16 %v1822, %v1814
    %v1975 = vpack.c.b16 %v1823, %v1815
    %v1976 = vpack.c.b16 %v1824, %v1816
    %v1977 = vpack.c.b16 %v1833, %v1825
    %v1978 = vpack.c.b16 %v1834, %v1826
    %v1979 = vpack.c.b16 %v1835, %v1827
    %v1980 = vpack.c.b16 %v1836, %v1828
    %v1981 = vpack.c.b16 %v1837, %v1829
    %v1982 = vpack.c.b16 %v1838, %v1830
    %v1983 = vpack.c.b16 %v1839, %v1831
    %v1984 = vpack.c.b16 %v1840, %v1832
    %v1985 = vpack.c.b16 %v1849, %v1841
    %v1986 = vpack.c.b16 %v1850, %v1842
    %v1987 = vpack.c.b16 %v1851, %v1843
    %v1988 = vpack.c.b16 %v1852, %v1844
    %v1989 = vpack.c.b16 %v1853, %v1845
    %v1990 = vpack.c.b16 %v1854, %v1846
    %v1991 = vpack.c.b16 %v1855, %v1847
    %v1992 = vpack.c.b16 %v1856, %v1848
    %v1993 = vpack.c.b16 %v1865, %v1857
    %v1994 = vpack.c.b16 %v1866, %v1858
    %v1995 = vpack.c.b16 %v1867, %v1859
    %v1996 = vpack.c.b16 %v1868, %v1860
    %v1997 = vpack.c.b16 %v1869, %v1861
    %v1998 = vpack.c.b16 %v1870, %v1862
    %v1999 = vpack.c.b16 %v1871, %v1863
    %v2000 = vpack.c.b16 %v1872, %v1864
    %2129 = vmatprep.subr.bf16.mxu0 %v1874
    %2130 = vmatpush1.bf16.msra.mxu0 %v1873
    %2131 = vmatprep.subr.bf16.mxu0 %v1882
    %2132 = vmatpush1.bf16.msra.mxu0 %v1881
    %2133 = vmatprep.subr.bf16.mxu0 %v1890
    %2134 = vmatpush1.bf16.msra.mxu0 %v1889
    %2135 = vmatprep.subr.bf16.mxu0 %v1898
    %2136 = vmatpush1.bf16.msra.mxu0 %v1897
    %2137 = vmatprep.subr.bf16.mxu0 %v1906
    %2138 = vmatpush1.bf16.msra.mxu0 %v1905
    %2139 = vmatprep.subr.bf16.mxu0 %v1914
    %2140 = vmatpush1.bf16.msra.mxu0 %v1913
    %2141 = vmatprep.subr.bf16.mxu0 %v1922
    %2142 = vmatpush1.bf16.msra.mxu0 %v1921
    %2143 = vmatprep.subr.bf16.mxu0 %v1930
    %2144 = vmatpush1.bf16.msra.mxu0 %v1929
    %2145 = vmatprep.subr.bf16.mxu0 %v1938
    %2146 = vmatpush1.bf16.msra.mxu0 %v1937
    %2147 = vmatprep.subr.bf16.mxu0 %v1946
    %2148 = vmatpush1.bf16.msra.mxu0 %v1945
    %2149 = vmatprep.subr.bf16.mxu0 %v1954
    %2150 = vmatpush1.bf16.msra.mxu0 %v1953
    %2151 = vmatprep.subr.bf16.mxu0 %v1962
    %2152 = vmatpush1.bf16.msra.mxu0 %v1961
    %2153 = vmatprep.subr.bf16.mxu0 %v1970
    %2154 = vmatpush1.bf16.msra.mxu0 %v1969
    %2155 = vmatprep.subr.bf16.mxu0 %v1978
    %2156 = vmatpush1.bf16.msra.mxu0 %v1977
    %2157 = vmatprep.subr.bf16.mxu0 %v1986
    %2158 = vmatpush1.bf16.msra.mxu0 %v1985
    %2159 = vmatprep.subr.bf16.mxu0 %v1994
    %2160 = vmatpush1.bf16.msra.mxu0 %v1993
    %2161 = vmatprep.mubr.bf16.mxu0 %v1318
    %2162 = vmatmul.mubr.bf16.gmra.mrb[0].mxu0 %v1317
    %v2163 = vpop.f32.mrb[0].mxu0
    %v2164 = vadd.f32 %v1452, %v2163
    %v2165 = vpop.f32.mrb[0].mxu0
    %v2166 = vadd.f32 %v1456, %v2165
    %v2167 = vpop.f32.mrb[0].mxu0
    %v2168 = vpop.f32.mrb[0].mxu0
    %2169 = vdwg.mxu0
    %2170 = vmatprep.subr.bf16.mxu0 %v1876
    %2171 = vmatpush1.bf16.msra.mxu0 %v1875
    %2172 = vmatprep.subr.bf16.mxu0 %v1884
    %2173 = vmatpush1.bf16.msra.mxu0 %v1883
    %2174 = vmatprep.subr.bf16.mxu0 %v1892
    %2175 = vmatpush1.bf16.msra.mxu0 %v1891
    %2176 = vmatprep.subr.bf16.mxu0 %v1900
    %2177 = vmatpush1.bf16.msra.mxu0 %v1899
    %2178 = vmatprep.subr.bf16.mxu0 %v1908
    %2179 = vmatpush1.bf16.msra.mxu0 %v1907
    %2180 = vmatprep.subr.bf16.mxu0 %v1916
    %2181 = vmatpush1.bf16.msra.mxu0 %v1915
    %2182 = vmatprep.subr.bf16.mxu0 %v1924
    %2183 = vmatpush1.bf16.msra.mxu0 %v1923
    %2184 = vmatprep.subr.bf16.mxu0 %v1932
    %2185 = vmatpush1.bf16.msra.mxu0 %v1931
    %2186 = vmatprep.subr.bf16.mxu0 %v1940
    %2187 = vmatpush1.bf16.msra.mxu0 %v1939
    %2188 = vmatprep.subr.bf16.mxu0 %v1948
    %2189 = vmatpush1.bf16.msra.mxu0 %v1947
    %2190 = vmatprep.subr.bf16.mxu0 %v1956
    %2191 = vmatpush1.bf16.msra.mxu0 %v1955
    %2192 = vmatprep.subr.bf16.mxu0 %v1964
    %2193 = vmatpush1.bf16.msra.mxu0 %v1963
    %2194 = vmatprep.subr.bf16.mxu0 %v1972
    %2195 = vmatpush1.bf16.msra.mxu0 %v1971
    %2196 = vmatprep.subr.bf16.mxu0 %v1980
    %2197 = vmatpush1.bf16.msra.mxu0 %v1979
    %2198 = vmatprep.subr.bf16.mxu0 %v1988
    %2199 = vmatpush1.bf16.msra.mxu0 %v1987
    %2200 = vmatprep.subr.bf16.mxu0 %v1996
    %2201 = vmatpush1.bf16.msra.mxu0 %v1995
    %2202 = vmatprep.mubr.bf16.mxu0 %v1318
    %2203 = vmatmul.mubr.bf16.gmra.mrb[0].mxu0 %v1317
    %v2204 = vpop.f32.mrb[0].mxu0
    %v2205 = vadd.f32 %v1460, %v2204
    %v2206 = vpop.f32.mrb[0].mxu0
    %v2207 = vadd.f32 %v1464, %v2206
    %v2208 = vpop.f32.mrb[0].mxu0
    %v2209 = vpop.f32.mrb[0].mxu0
    %2210 = vdwg.mxu0
    %2211 = vmatprep.subr.bf16.mxu0 %v1878
    %2212 = vmatpush1.bf16.msra.mxu0 %v1877
    %2213 = vmatprep.subr.bf16.mxu0 %v1886
    %2214 = vmatpush1.bf16.msra.mxu0 %v1885
    %2215 = vmatprep.subr.bf16.mxu0 %v1894
    %2216 = vmatpush1.bf16.msra.mxu0 %v1893
    %2217 = vmatprep.subr.bf16.mxu0 %v1902
    %2218 = vmatpush1.bf16.msra.mxu0 %v1901
    %2219 = vmatprep.subr.bf16.mxu0 %v1910
    %2220 = vmatpush1.bf16.msra.mxu0 %v1909
    %2221 = vmatprep.subr.bf16.mxu0 %v1918
    %2222 = vmatpush1.bf16.msra.mxu0 %v1917
    %2223 = vmatprep.subr.bf16.mxu0 %v1926
    %2224 = vmatpush1.bf16.msra.mxu0 %v1925
    %2225 = vmatprep.subr.bf16.mxu0 %v1934
    %2226 = vmatpush1.bf16.msra.mxu0 %v1933
    %2227 = vmatprep.subr.bf16.mxu0 %v1942
    %2228 = vmatpush1.bf16.msra.mxu0 %v1941
    %2229 = vmatprep.subr.bf16.mxu0 %v1950
    %2230 = vmatpush1.bf16.msra.mxu0 %v1949
    %2231 = vmatprep.subr.bf16.mxu0 %v1958
    %2232 = vmatpush1.bf16.msra.mxu0 %v1957
    %2233 = vmatprep.subr.bf16.mxu0 %v1966
    %2234 = vmatpush1.bf16.msra.mxu0 %v1965
    %2235 = vmatprep.subr.bf16.mxu0 %v1974
    %2236 = vmatpush1.bf16.msra.mxu0 %v1973
    %2237 = vmatprep.subr.bf16.mxu0 %v1982
    %2238 = vmatpush1.bf16.msra.mxu0 %v1981
    %2239 = vmatprep.subr.bf16.mxu0 %v1990
    %2240 = vmatpush1.bf16.msra.mxu0 %v1989
    %2241 = vmatprep.subr.bf16.mxu0 %v1998
    %2242 = vmatpush1.bf16.msra.mxu0 %v1997
    %2243 = vmatprep.mubr.bf16.mxu0 %v1318
    %2244 = vmatmul.mubr.bf16.gmra.mrb[0].mxu0 %v1317
    %v2245 = vpop.f32.mrb[0].mxu0
    %v2246 = vadd.f32 %v1468, %v2245
    %v2247 = vpop.f32.mrb[0].mxu0
    %v2248 = vadd.f32 %v1472, %v2247
    %v2249 = vpop.f32.mrb[0].mxu0
    %v2250 = vpop.f32.mrb[0].mxu0
    %2251 = vdwg.mxu0
    %2252 = vmatprep.subr.bf16.mxu0 %v1880
    %2253 = vmatpush1.bf16.msra.mxu0 %v1879
    %2254 = vmatprep.subr.bf16.mxu0 %v1888
    %2255 = vmatpush1.bf16.msra.mxu0 %v1887
    %2256 = vmatprep.subr.bf16.mxu0 %v1896
    %2257 = vmatpush1.bf16.msra.mxu0 %v1895
    %2258 = vmatprep.subr.bf16.mxu0 %v1904
    %2259 = vmatpush1.bf16.msra.mxu0 %v1903
    %2260 = vmatprep.subr.bf16.mxu0 %v1912
    %2261 = vmatpush1.bf16.msra.mxu0 %v1911
    %2262 = vmatprep.subr.bf16.mxu0 %v1920
    %2263 = vmatpush1.bf16.msra.mxu0 %v1919
    %2264 = vmatprep.subr.bf16.mxu0 %v1928
    %2265 = vmatpush1.bf16.msra.mxu0 %v1927
    %2266 = vmatprep.subr.bf16.mxu0 %v1936
    %2267 = vmatpush1.bf16.msra.mxu0 %v1935
    %2268 = vmatprep.subr.bf16.mxu0 %v1944
    %2269 = vmatpush1.bf16.msra.mxu0 %v1943
    %2270 = vmatprep.subr.bf16.mxu0 %v1952
    %2271 = vmatpush1.bf16.msra.mxu0 %v1951
    %2272 = vmatprep.subr.bf16.mxu0 %v1960
    %2273 = vmatpush1.bf16.msra.mxu0 %v1959
    %2274 = vmatprep.subr.bf16.mxu0 %v1968
    %2275 = vmatpush1.bf16.msra.mxu0 %v1967
    %2276 = vmatprep.subr.bf16.mxu0 %v1976
    %2277 = vmatpush1.bf16.msra.mxu0 %v1975
    %2278 = vmatprep.subr.bf16.mxu0 %v1984
    %2279 = vmatpush1.bf16.msra.mxu0 %v1983
    %2280 = vmatprep.subr.bf16.mxu0 %v1992
    %2281 = vmatpush1.bf16.msra.mxu0 %v1991
    %2282 = vmatprep.subr.bf16.mxu0 %v2000
    %2283 = vmatpush1.bf16.msra.mxu0 %v1999
    %2284 = vmatprep.mubr.bf16.mxu0 %v1318
    %2285 = vmatmul.mubr.bf16.gmra.mrb[0].mxu0 %v1317
    %v2286 = vpop.f32.mrb[0].mxu0
    %v2287 = vadd.f32 %v1476, %v2286
    %v2288 = vpop.f32.mrb[0].mxu0
    %v2289 = vadd.f32 %v1480, %v2288
    %v2290 = vpop.f32.mrb[0].mxu0
    %v2291 = vpop.f32.mrb[0].mxu0
    %2292 = vdwg.mxu0
    %v2293 = vsub.f32 0.0, %v2164
    %v2294 = vsub.f32 0.0, %v2166
    %v2295 = vsub.f32 0.0, %v2205
    %v2296 = vsub.f32 0.0, %v2207
    %v2297 = vsub.f32 0.0, %v2246
    %v2298 = vsub.f32 0.0, %v2248
    %v2299 = vsub.f32 0.0, %v2287
    %v2300 = vsub.f32 0.0, %v2289
    %v2301 = vmul.f32 %v2293, 1.442695
    %v2302 = vpow.pop %v2301
    %v2303 = vmul.f32 %v2294, 1.442695
    %v2304 = vpow.pop %v2303
    %v2305 = vmul.f32 %v2295, 1.442695
    %v2306 = vpow.pop %v2305
    %v2307 = vmul.f32 %v2296, 1.442695
    %v2308 = vpow.pop %v2307
    %v2309 = vmul.f32 %v2297, 1.442695
    %v2310 = vpow.pop %v2309
    %v2311 = vmul.f32 %v2298, 1.442695
    %v2312 = vpow.pop %v2311
    %v2313 = vmul.f32 %v2299, 1.442695
    %v2314 = vpow.pop %v2313
    %v2315 = vmul.f32 %v2300, 1.442695
    %v2316 = vpow.pop %v2315
    %v2317 = vadd.f32 %v2302, 1.0
    %v2318 = vadd.f32 %v2304, 1.0
    %v2319 = vadd.f32 %v2306, 1.0
    %v2320 = vadd.f32 %v2308, 1.0
    %v2321 = vadd.f32 %v2310, 1.0
    %v2322 = vadd.f32 %v2312, 1.0
    %v2323 = vadd.f32 %v2314, 1.0
    %v2324 = vadd.f32 %v2316, 1.0
    %v2325 = vrcp.pop %v2317
    %v2326 = vrcp.pop %v2318
    %v2327 = vrcp.pop %v2319
    %v2328 = vrcp.pop %v2320
    %v2329 = vrcp.pop %v2321
    %v2330 = vrcp.pop %v2322
    %v2331 = vrcp.pop %v2323
    %v2332 = vrcp.pop %v2324
    %2333 = vst [vmem:[#allocation7] sm:$0xff] %v2325
    %2334 = vst [vmem:[#allocation7 + $0x8] sm:$0xff] %v2326
    %2335 = vst [vmem:[#allocation7 + $0x10] sm:$0xff] %v2327
    %2336 = vst [vmem:[#allocation7 + $0x18] sm:$0xff] %v2328
    %2337 = vst [vmem:[#allocation7 + $0x20] sm:$0xff] %v2329
    %2338 = vst [vmem:[#allocation7 + $0x28] sm:$0xff] %v2330
    %2339 = vst [vmem:[#allocation7 + $0x30] sm:$0xff] %v2331
    %2340 = vst [vmem:[#allocation7 + $0x38] sm:$0xff] %v2332
    %2342 = vrot.lane.b32.xlu0 %v1232, 64
    %v2343 = vpop.permute.xlu0 %2342
    %vm2345 = vcmask 523264
    %v2346 = vsel %vm2345, %v1218, %v2343
    %vm2347 = vcmask 785408
    %v2348 = vsel %vm2347, %v2346, 0.0
    %2349 = vst [vmem:[#allocation8] sm:$0xff] %v2348
    // Predicated region
    $region50: #{tpu_custom_call.1} parent=1 // pred_check
      _
    $region51: #{tpu_custom_call.1} parent=1 // pred_check_branch
      %2351 = sbr.rel (0) target = $region53
    $region52: #{tpu_custom_call.1} parent=1 // pred_region
      %s2353 = ssub.s32 1024, 1024
      %2354 = vsyncadd [#allocation4], %s2353
      %s2356 = sshll.u32 [#allocation7], 4
      %s2357 = int_to_ptr.vmem [resolvable:$true] %s2356
      %2359 = dma.vmem_to_hbm [thread:$0]  %s2357, 1024, %s10, [#allocation4]
    $region53: #{tpu_custom_call.1} parent=1 // pred_fallthru
      _
    // Predicated region
    $region54: #{tpu_custom_call.1} parent=1 // pred_check
      _
    $region55: #{tpu_custom_call.1} parent=1 // pred_check_branch
      %2361 = sbr.rel (0) target = $region57
    $region56: #{tpu_custom_call.1} parent=1 // pred_region
      %s2363 = ssub.s32 128, 128
      %2364 = vsyncadd [#allocation9], %s2363
      %s2366 = sshll.u32 [#allocation8], 4
      %s2367 = int_to_ptr.vmem [resolvable:$true] %s2366
      %2369 = dma.vmem_to_hbm [thread:$0]  %s2367, 128, %s11, [#allocation9]
    $region57: #{tpu_custom_call.1} parent=1 // pred_fallthru
      _
    // Predicated region
    $region58: #{tpu_custom_call.1} parent=1 // pred_check
      _
    $region59: #{tpu_custom_call.1} parent=1 // pred_check_branch
      %2371 = sbr.rel (0) target = $region61
    $region60: #{tpu_custom_call.1} parent=1 // pred_region
      %2372 = dma.done [#allocation4], 1024
    $region61: #{tpu_custom_call.1} parent=1 // pred_fallthru
      _
    // Predicated region
    $region62: #{tpu_custom_call.1} parent=1 // pred_check
      _
    $region63: #{tpu_custom_call.1} parent=1 // pred_check_branch
      %2374 = sbr.rel (0) target = $region65
    $region64: #{tpu_custom_call.1} parent=1 // pred_region
      %2375 = dma.done [#allocation9], 128
    $region65: #{tpu_custom_call.1} parent=1 // pred_fallthru
      _
    %2376 = vsyncpa [#allocation3], 1
    %2377 = vsyncpa [#allocation6], 1
    %2378 = vsyncpa [#allocation4], 1
    %2379 = vsyncpa [#allocation9], 1

</llo_original>
